<compile_context>
chip_gen: v7x
topology: tpu7x:2x2x1
jax: 0.10.0
libtpu: 0.0.40
codegen_flags: <defaults>
</compile_context>

<pallas_src>
import functools

import numpy as np
import jax
import jax.numpy as jnp
from jax.experimental import pallas as pl
from jax.experimental.pallas import tpu as pltpu


# --------------------------------------------------------------------------------------
# Kernel
# --------------------------------------------------------------------------------------
def _decoder_kernel(x_ref, skip_ref, wt_ref, w1c_ref, w2c_ref, mask_ref, o_ref,
                    ext1, ext2, a1, a2, *, Wp):
    f32 = jnp.float32
    M = Wp + 1                         # left/right margin of the extended canvas
    C1 = ext1.shape[0]                 # 4*in_c   (sub-pixel channels of concat(up, skip))
    C2 = ext2.shape[0]                 # 4*out_c  (sub-pixel channels of conv_1 output)
    Cup = wt_ref.shape[0]              # 4*out_c  (sub-pixel channels of the convT output)
    NXW = x_ref.shape[2]               # H * Wp   (width-padded rows, flattened)
    NEV = o_ref.shape[2]               # evaluated padded positions, rounded up to 128

    # Fresh zero canvases each grid step: the untouched ring IS the conv "padding=1".
    ext1[...] = jnp.zeros(ext1.shape, f32)
    ext2[...] = jnp.zeros(ext2.shape, f32)

    # ---- ConvTranspose2d(2x2, stride 2): all 4 taps fused in ONE dot.  Because kernel
    #      size == stride, the result already IS the space-to-depth form of the upsampled
    #      image (no stride-2 scatter needed, width pad columns stay exactly zero).
    u = jnp.dot(wt_ref[...], x_ref[0], preferred_element_type=f32)       # (4*out_c, H*Wp)

    # ---- channel-concat(up, skip) fused as two contiguous slice stores into the padded
    #      coarse canvas (single store per half; top/bottom pad rows stay zero).
    ext1[0:Cup, M + Wp:M + Wp + NXW] = u
    ext1[Cup:C1, M + Wp:M + Wp + NXW] = skip_ref[0]

    # ---- conv_1 (+ReLU): stack the 9 coarse taps along K -> ONE (4*out_c, 9*C1) dot.
    for a in range(3):
        for b in range(3):
            t = a * 3 + b
            s = a * Wp + b
            a1[t * C1:(t + 1) * C1, :] = ext1[:, s:s + NEV]
    h = jnp.maximum(jnp.dot(w1c_ref[...], a1[...], preferred_element_type=f32), 0.0)

    # Zero the halo/garbage positions and re-embed with a single wide store.
    ext2[:, M:M + NEV] = h * mask_ref[...]

    # ---- conv_2 (+ReLU): same stacked-tap single dot (K = 9 * 4*out_c).
    for a in range(3):
        for b in range(3):
            t = a * 3 + b
            s = a * Wp + b
            a2[t * C2:(t + 1) * C2, :] = ext2[:, s:s + NEV]
    y = jnp.maximum(jnp.dot(w2c_ref[...], a2[...], preferred_element_type=f32), 0.0)

    o_ref[0] = y.astype(o_ref.dtype)                                     # (4*out_c, 128)


# --------------------------------------------------------------------------------------
# Host-side weight composition (tiny, done once, outside jit)
# --------------------------------------------------------------------------------------
def _compose_conv_weight(w, cin_map, out_c):
    """Fold a fine-grid 3x3/pad=1 conv into the coarse sub-pixel domain.

    w: (out_c, c_fine, 3, 3).  cin_map[ch] = (qh, qw, c_fine) for each sub-pixel input
    channel.  Returns (4*out_c, 9*Cin_sub): output channel (ph*2+pw)*out_c+o, input index
    t*Cin_sub+ch with t = (dh+1)*3 + (dw+1) over coarse offsets dh, dw in {-1,0,1}.
    """
    cin = len(cin_map)
    wc = np.zeros((4 * out_c, 9 * cin), np.float32)
    for ph in range(2):
        for pw in range(2):
            for o in range(out_c):
                po = (ph * 2 + pw) * out_c + o
                for dh in (-1, 0, 1):
                    for dw in (-1, 0, 1):
                        t = (dh + 1) * 3 + (dw + 1)
                        for ch, (qh, qw, cc) in enumerate(cin_map):
                            kh = 2 * dh + qh - ph + 1
                            kw = 2 * dw + qw - pw + 1
                            if 0 <= kh < 3 and 0 <= kw < 3:
                                wc[po, t * cin + ch] = w[o, cc, kh, kw]
    return wc


def prepare_decoder(params, H, W):
    """Build the composed kernel weights + halo mask (all O(channels^2) / O(spatial))."""
    wT = np.asarray(params["wT"])          # (in_c, out_c, 2, 2)
    w1 = np.asarray(params["w1"])          # (out_c, in_c, 3, 3)
    w2 = np.asarray(params["w2"])          # (out_c, out_c, 3, 3)
    in_c, out_c = wT.shape[0], wT.shape[1]
    skip_c = in_c - out_c
    assert skip_c > 0

    Wp, Hp = W + 2, H + 2
    PADN = Hp * Wp
    NEV = ((PADN + 127) // 128) * 128      # lane-dense evaluated extent

    # ConvT taps stacked: wt[(qh*2+qw)*out_c + o, ci] = wT[ci, o, qh, qw]
    wt_stack = np.transpose(wT, (2, 3, 1, 0)).reshape(4 * out_c, in_c).astype(np.float32)

    # conv_1 input = concat(up, skip) in sub-pixel ordering [up block ; skip block].
    cmap1 = []
    for ch in range(4 * in_c):
        if ch < 4 * out_c:
            q, cc = ch // out_c, ch % out_c
        else:
            z = ch - 4 * out_c
            q, cc = z // skip_c, out_c + z % skip_c
        cmap1.append((q // 2, q % 2, cc))
    w1c = _compose_conv_weight(w1, cmap1, out_c)

    # conv_2 input = conv_1 output, sub-pixel ordering (q*out_c + c).
    cmap2 = [((ch // out_c) // 2, (ch // out_c) % 2, ch % out_c) for ch in range(4 * out_c)]
    w2c = _compose_conv_weight(w2, cmap2, out_c)

    mask = np.zeros((1, NEV), np.float32)
    for r in range(1, H + 1):
        mask[0, r * Wp + 1:r * Wp + 1 + W] = 1.0

    return dict(wt=jnp.asarray(wt_stack), w1c=jnp.asarray(w1c),
                w2c=jnp.asarray(w2c), mask=jnp.asarray(mask))


# --------------------------------------------------------------------------------------
# Wrapper (traceable / jittable)
# --------------------------------------------------------------------------------------
def decoder_block_apply(x, skip, prep):
    """Matches DecoderBlock.forward(x, skip_connection_output): NCHW in / NCHW out."""
    B, in_c, H, W = x.shape
    out_c = prep["wt"].shape[0] // 4
    skip_c = in_c - out_c
    assert skip.shape == (B, skip_c, 2 * H, 2 * W), skip.shape

    Hu, Wu = 2 * H, 2 * W
    Hp, Wp = H + 2, W + 2
    PADN = Hp * Wp
    NEV = prep["mask"].shape[1]
    NXW = H * Wp
    M = Wp + 1
    EXTN = NEV + 2 * M
    C1, C2 = 4 * in_c, 4 * out_c

    # Width-pad x (the fine zero pad folds exactly into the coarse canvas pad columns).
    x_flat = jnp.pad(x, ((0, 0), (0, 0), (0, 0), (1, 1))).reshape(B, in_c, NXW)

    # Space-to-depth of the skip connection (sub-pixel channels), then width-pad.
    skip_sub = skip.reshape(B, skip_c, H, 2, W, 2).transpose(0, 3, 5, 1, 2, 4)
    skip_sub = skip_sub.reshape(B, 4 * skip_c, H, W)
    skip_flat = jnp.pad(skip_sub, ((0, 0), (0, 0), (0, 0), (1, 1))).reshape(B, 4 * skip_c, NXW)

    kern = functools.partial(_decoder_kernel, Wp=Wp)

    out = pl.pallas_call(
        kern,
        out_shape=jax.ShapeDtypeStruct((B, C2, NEV), jnp.float32),
        grid=(B,),
        in_specs=[
            pl.BlockSpec((1, in_c, NXW), lambda b: (b, 0, 0)),
            pl.BlockSpec((1, 4 * skip_c, NXW), lambda b: (b, 0, 0)),
            pl.BlockSpec((C2, in_c), lambda b: (0, 0)),
            pl.BlockSpec((C2, 9 * C1), lambda b: (0, 0)),
            pl.BlockSpec((C2, 9 * C2), lambda b: (0, 0)),
            pl.BlockSpec((1, NEV), lambda b: (0, 0)),
        ],
        out_specs=pl.BlockSpec((1, C2, NEV), lambda b: (b, 0, 0)),
        scratch_shapes=[
            pltpu.VMEM((C1, EXTN), jnp.float32),        # padded concat(up, skip) canvas
            pltpu.VMEM((C2, EXTN), jnp.float32),        # padded conv_1-output canvas
            pltpu.VMEM((9 * C1, NEV), jnp.float32),     # stacked taps for conv_1
            pltpu.VMEM((9 * C2, NEV), jnp.float32),     # stacked taps for conv_2
        ],
        compiler_params=pltpu.CompilerParams(dimension_semantics=("parallel",)),
    )(x_flat, skip_flat, prep["wt"], prep["w1c"], prep["w2c"], prep["mask"])

    # Interior gather + depth-to-space (pixel shuffle) back to NCHW — few-KB XLA glue.
    out = out[:, :, :PADN].reshape(B, 2, 2, out_c, Hp, Wp)[:, :, :, :, 1:1 + H, 1:1 + W]
    out = out.transpose(0, 3, 4, 1, 5, 2).reshape(B, out_c, Hu, Wu)
    return out


# --------------------------------------------------------------------------------------
# Plain-JAX reference (mirrors the PyTorch forward) for self-check
# --------------------------------------------------------------------------------------
def _reference(x, skip, params):
    B, _, H, W = x.shape
    wT, w1, w2 = params["wT"], params["w1"], params["w2"]
    Cout = wT.shape[1]
    up = jnp.einsum("ncij,cokl->noikjl", x, wT).reshape(B, Cout, 2 * H, 2 * W)
    cat = jnp.concatenate([up, skip], axis=1)

    def conv3(z, w):
        Ho, Wo = z.shape[2], z.shape[3]
        zp = jnp.pad(z, ((0, 0), (0, 0), (1, 1), (1, 1)))
        out = jnp.zeros((z.shape[0], w.shape[0], Ho, Wo), jnp.float32)
        for kh in range(3):
            for kw in range(3):
                out = out + jnp.einsum(
                    "ncyx,oc->noyx", zp[:, :, kh:kh + Ho, kw:kw + Wo], w[:, :, kh, kw]
                )
        return jnp.maximum(out, 0.0)

    return conv3(conv3(cat, w1), w2)


if __name__ == "__main__":
    # DecoderBlock(in_c=8, out_c=4); skip has in_c - out_c = 4 channels so the concat
    # gives conv_1 its expected in_c input channels (standard U-Net usage).
    in_c, out_c = 8, 4
    B, H, W = 2, 8, 8

    key = jax.random.PRNGKey(0)
    k1, k2, k3, k4, k5 = jax.random.split(key, 5)
    params = {
        "wT": 0.1 * jax.random.normal(k1, (in_c, out_c, 2, 2), jnp.float32),   # ConvTranspose2d
        "w1": 0.1 * jax.random.normal(k2, (out_c, in_c, 3, 3), jnp.float32),   # conv_1
        "w2": 0.1 * jax.random.normal(k3, (out_c, out_c, 3, 3), jnp.float32),  # conv_2
    }
    x = jax.random.normal(k4, (B, in_c, H, W), jnp.float32)
    skip = jax.random.normal(k5, (B, in_c - out_c, 2 * H, 2 * W), jnp.float32)

    prep = prepare_decoder(params, H, W)                  # host-side weight composition
    out = jax.jit(decoder_block_apply)(x, skip, prep)
    out = jax.block_until_ready(out)

    ref = _reference(x, skip, params)
    assert out.shape == (B, out_c, 2 * H, 2 * W), out.shape
    max_err = float(jnp.max(jnp.abs(out - ref)))
    assert max_err < 1e-3, max_err
    print("KERNEL_OK")
</pallas_src>

<mosaic_0001>
module attributes {stable_mosaic.version = 11 : i64} {
  func.func @_decoder_kernel(%arg0: i32, %arg1: memref<1x8x80xf32, #tpu.memory_space<vmem>>, %arg2: memref<1x16x80xf32, #tpu.memory_space<vmem>>, %arg3: memref<16x8xf32, #tpu.memory_space<vmem>>, %arg4: memref<16x288xf32, #tpu.memory_space<vmem>>, %arg5: memref<16x144xf32, #tpu.memory_space<vmem>>, %arg6: memref<1x128xf32, #tpu.memory_space<vmem>>, %arg7: memref<1x16x128xf32, #tpu.memory_space<vmem>>, %arg8: memref<32x150xf32, #tpu.memory_space<vmem>>, %arg9: memref<16x150xf32, #tpu.memory_space<vmem>>, %arg10: memref<288x128xf32, #tpu.memory_space<vmem>>, %arg11: memref<144x128xf32, #tpu.memory_space<vmem>>) attributes {dimension_semantics = [#tpu.dimension_semantics<parallel>], iteration_bounds = array<i64: 2>, scalar_prefetch = 0 : i64, scratch_operands = 4 : i64, tpu.core_type = #tpu.core_type<tc>, window_params = [{transform_indices = @transform_0, window_bounds = array<i64: 1, 8, 80>}, {transform_indices = @transform_1, window_bounds = array<i64: 1, 16, 80>}, {pipeline_mode = #tpu.pipeline_mode<synchronous>, transform_indices = @transform_2, window_bounds = array<i64: 16, 8>}, {pipeline_mode = #tpu.pipeline_mode<synchronous>, transform_indices = @transform_3, window_bounds = array<i64: 16, 288>}, {pipeline_mode = #tpu.pipeline_mode<synchronous>, transform_indices = @transform_4, window_bounds = array<i64: 16, 144>}, {pipeline_mode = #tpu.pipeline_mode<synchronous>, transform_indices = @transform_5, window_bounds = array<i64: 1, 128>}, {transform_indices = @transform_6, window_bounds = array<i64: 1, 16, 128>}]} {
    %cst = arith.constant 0.000000e+00 : f32
    %0 = vector.broadcast %cst : f32 to vector<32x150xf32>
    %c0 = arith.constant 0 : index
    %c0_0 = arith.constant 0 : index
    %1 = vector.load %arg8[%c0, %c0_0] : memref<32x150xf32, #tpu.memory_space<vmem>>, vector<32x150xf32>
    tpu.vector_store %arg8[%c0, %c0_0], %0 {strides = array<i32>} : memref<32x150xf32, #tpu.memory_space<vmem>>, vector<32x150xf32>,
    %cst_1 = arith.constant 0.000000e+00 : f32
    %2 = vector.broadcast %cst_1 : f32 to vector<16x150xf32>
    %c0_2 = arith.constant 0 : index
    %c0_3 = arith.constant 0 : index
    %3 = vector.load %arg9[%c0_2, %c0_3] : memref<16x150xf32, #tpu.memory_space<vmem>>, vector<16x150xf32>
    tpu.vector_store %arg9[%c0_2, %c0_3], %2 {strides = array<i32>} : memref<16x150xf32, #tpu.memory_space<vmem>>, vector<16x150xf32>,
    %c0_4 = arith.constant 0 : index
    %c0_5 = arith.constant 0 : index
    %4 = vector.load %arg3[%c0_4, %c0_5] : memref<16x8xf32, #tpu.memory_space<vmem>>, vector<16x8xf32>
    %c0_6 = arith.constant 0 : index
    %c0_7 = arith.constant 0 : index
    %c0_8 = arith.constant 0 : index
    %5 = vector.load %arg1[%c0_6, %c0_7, %c0_8] : memref<1x8x80xf32, #tpu.memory_space<vmem>>, vector<1x8x80xf32>
    %6 = vector.shape_cast %5 : vector<1x8x80xf32> to vector<8x80xf32>
    %cst_9 = arith.constant dense<0.000000e+00> : vector<16x80xf32>
    %7 = tpu.matmul %4, %6, %cst_9 {dimension_numbers = #tpu.dot_dimension_numbers<[1], [0], [0], [1], [0, 0, 1, 1], [], []>} : vector<16x8xf32>, vector<8x80xf32>, vector<16x80xf32> -> vector<16x80xf32>
    %c0_10 = arith.constant 0 : index
    %c21 = arith.constant 21 : index
    %8 = vector.load %arg8[%c0_10, %c21] : memref<32x150xf32, #tpu.memory_space<vmem>>, vector<16x80xf32>
    tpu.vector_store %arg8[%c0_10, %c21], %7 {strides = array<i32>} : memref<32x150xf32, #tpu.memory_space<vmem>>, vector<16x80xf32>,
    %c0_11 = arith.constant 0 : index
    %c0_12 = arith.constant 0 : index
    %c0_13 = arith.constant 0 : index
    %9 = vector.load %arg2[%c0_11, %c0_12, %c0_13] : memref<1x16x80xf32, #tpu.memory_space<vmem>>, vector<1x16x80xf32>
    %10 = vector.shape_cast %9 : vector<1x16x80xf32> to vector<16x80xf32>
    %c16 = arith.constant 16 : index
    %c21_14 = arith.constant 21 : index
    %11 = vector.load %arg8[%c16, %c21_14] : memref<32x150xf32, #tpu.memory_space<vmem>>, vector<16x80xf32>
    tpu.vector_store %arg8[%c16, %c21_14], %10 {strides = array<i32>} : memref<32x150xf32, #tpu.memory_space<vmem>>, vector<16x80xf32>,
    %c0_15 = arith.constant 0 : index
    %c0_16 = arith.constant 0 : index
    %12 = vector.load %arg8[%c0_15, %c0_16] : memref<32x150xf32, #tpu.memory_space<vmem>>, vector<32x128xf32>
    %c0_17 = arith.constant 0 : index
    %c0_18 = arith.constant 0 : index
    %13 = vector.load %arg10[%c0_17, %c0_18] : memref<288x128xf32, #tpu.memory_space<vmem>>, vector<32x128xf32>
    tpu.vector_store %arg10[%c0_17, %c0_18], %12 {strides = array<i32>} : memref<288x128xf32, #tpu.memory_space<vmem>>, vector<32x128xf32>,
    %c0_19 = arith.constant 0 : index
    %c1 = arith.constant 1 : index
    %14 = vector.load %arg8[%c0_19, %c1] : memref<32x150xf32, #tpu.memory_space<vmem>>, vector<32x128xf32>
    %c32 = arith.constant 32 : index
    %c0_20 = arith.constant 0 : index
    %15 = vector.load %arg10[%c32, %c0_20] : memref<288x128xf32, #tpu.memory_space<vmem>>, vector<32x128xf32>
    tpu.vector_store %arg10[%c32, %c0_20], %14 {strides = array<i32>} : memref<288x128xf32, #tpu.memory_space<vmem>>, vector<32x128xf32>,
    %c0_21 = arith.constant 0 : index
    %c2 = arith.constant 2 : index
    %16 = vector.load %arg8[%c0_21, %c2] : memref<32x150xf32, #tpu.memory_space<vmem>>, vector<32x128xf32>
    %c64 = arith.constant 64 : index
    %c0_22 = arith.constant 0 : index
    %17 = vector.load %arg10[%c64, %c0_22] : memref<288x128xf32, #tpu.memory_space<vmem>>, vector<32x128xf32>
    tpu.vector_store %arg10[%c64, %c0_22], %16 {strides = array<i32>} : memref<288x128xf32, #tpu.memory_space<vmem>>, vector<32x128xf32>,
    %c0_23 = arith.constant 0 : index
    %c10 = arith.constant 10 : index
    %18 = vector.load %arg8[%c0_23, %c10] : memref<32x150xf32, #tpu.memory_space<vmem>>, vector<32x128xf32>
    %c96 = arith.constant 96 : index
    %c0_24 = arith.constant 0 : index
    %19 = vector.load %arg10[%c96, %c0_24] : memref<288x128xf32, #tpu.memory_space<vmem>>, vector<32x128xf32>
    tpu.vector_store %arg10[%c96, %c0_24], %18 {strides = array<i32>} : memref<288x128xf32, #tpu.memory_space<vmem>>, vector<32x128xf32>,
    %c0_25 = arith.constant 0 : index
    %c11 = arith.constant 11 : index
    %20 = vector.load %arg8[%c0_25, %c11] : memref<32x150xf32, #tpu.memory_space<vmem>>, vector<32x128xf32>
    %c128 = arith.constant 128 : index
    %c0_26 = arith.constant 0 : index
    %21 = vector.load %arg10[%c128, %c0_26] : memref<288x128xf32, #tpu.memory_space<vmem>>, vector<32x128xf32>
    tpu.vector_store %arg10[%c128, %c0_26], %20 {strides = array<i32>} : memref<288x128xf32, #tpu.memory_space<vmem>>, vector<32x128xf32>,
    %c0_27 = arith.constant 0 : index
    %c12 = arith.constant 12 : index
    %22 = vector.load %arg8[%c0_27, %c12] : memref<32x150xf32, #tpu.memory_space<vmem>>, vector<32x128xf32>
    %c160 = arith.constant 160 : index
    %c0_28 = arith.constant 0 : index
    %23 = vector.load %arg10[%c160, %c0_28] : memref<288x128xf32, #tpu.memory_space<vmem>>, vector<32x128xf32>
    tpu.vector_store %arg10[%c160, %c0_28], %22 {strides = array<i32>} : memref<288x128xf32, #tpu.memory_space<vmem>>, vector<32x128xf32>,
    %c0_29 = arith.constant 0 : index
    %c20 = arith.constant 20 : index
    %24 = vector.load %arg8[%c0_29, %c20] : memref<32x150xf32, #tpu.memory_space<vmem>>, vector<32x128xf32>
    %c192 = arith.constant 192 : index
    %c0_30 = arith.constant 0 : index
    %25 = vector.load %arg10[%c192, %c0_30] : memref<288x128xf32, #tpu.memory_space<vmem>>, vector<32x128xf32>
    tpu.vector_store %arg10[%c192, %c0_30], %24 {strides = array<i32>} : memref<288x128xf32, #tpu.memory_space<vmem>>, vector<32x128xf32>,
    %c0_31 = arith.constant 0 : index
    %c21_32 = arith.constant 21 : index
    %26 = vector.load %arg8[%c0_31, %c21_32] : memref<32x150xf32, #tpu.memory_space<vmem>>, vector<32x128xf32>
    %c224 = arith.constant 224 : index
    %c0_33 = arith.constant 0 : index
    %27 = vector.load %arg10[%c224, %c0_33] : memref<288x128xf32, #tpu.memory_space<vmem>>, vector<32x128xf32>
    tpu.vector_store %arg10[%c224, %c0_33], %26 {strides = array<i32>} : memref<288x128xf32, #tpu.memory_space<vmem>>, vector<32x128xf32>,
    %c0_34 = arith.constant 0 : index
    %c22 = arith.constant 22 : index
    %28 = vector.load %arg8[%c0_34, %c22] : memref<32x150xf32, #tpu.memory_space<vmem>>, vector<32x128xf32>
    %c256 = arith.constant 256 : index
    %c0_35 = arith.constant 0 : index
    %29 = vector.load %arg10[%c256, %c0_35] : memref<288x128xf32, #tpu.memory_space<vmem>>, vector<32x128xf32>
    tpu.vector_store %arg10[%c256, %c0_35], %28 {strides = array<i32>} : memref<288x128xf32, #tpu.memory_space<vmem>>, vector<32x128xf32>,
    %c0_36 = arith.constant 0 : index
    %c0_37 = arith.constant 0 : index
    %30 = vector.load %arg4[%c0_36, %c0_37] : memref<16x288xf32, #tpu.memory_space<vmem>>, vector<16x288xf32>
    %c0_38 = arith.constant 0 : index
    %c0_39 = arith.constant 0 : index
    %31 = vector.load %arg10[%c0_38, %c0_39] : memref<288x128xf32, #tpu.memory_space<vmem>>, vector<288x128xf32>
    %cst_40 = arith.constant dense<0.000000e+00> : vector<16x128xf32>
    %32 = tpu.matmul %30, %31, %cst_40 {dimension_numbers = #tpu.dot_dimension_numbers<[1], [0], [0], [1], [0, 0, 1, 1], [], []>} : vector<16x288xf32>, vector<288x128xf32>, vector<16x128xf32> -> vector<16x128xf32>
    %cst_41 = arith.constant 0.000000e+00 : f32
    %33 = vector.broadcast %cst_41 : f32 to vector<16x128xf32>
    %34 = arith.maximumf %32, %33 : vector<16x128xf32>
    %c0_42 = arith.constant 0 : index
    %c0_43 = arith.constant 0 : index
    %35 = vector.load %arg6[%c0_42, %c0_43] : memref<1x128xf32, #tpu.memory_space<vmem>>, vector<1x128xf32>
    %36 = vector.broadcast %35 : vector<1x128xf32> to vector<16x128xf32>
    %37 = arith.mulf %34, %36 : vector<16x128xf32>
    %c0_44 = arith.constant 0 : index
    %c11_45 = arith.constant 11 : index
    %38 = vector.load %arg9[%c0_44, %c11_45] : memref<16x150xf32, #tpu.memory_space<vmem>>, vector<16x128xf32>
    tpu.vector_store %arg9[%c0_44, %c11_45], %37 {strides = array<i32>} : memref<16x150xf32, #tpu.memory_space<vmem>>, vector<16x128xf32>,
    %c0_46 = arith.constant 0 : index
    %c0_47 = arith.constant 0 : index
    %39 = vector.load %arg9[%c0_46, %c0_47] : memref<16x150xf32, #tpu.memory_space<vmem>>, vector<16x128xf32>
    %c0_48 = arith.constant 0 : index
    %c0_49 = arith.constant 0 : index
    %40 = vector.load %arg11[%c0_48, %c0_49] : memref<144x128xf32, #tpu.memory_space<vmem>>, vector<16x128xf32>
    tpu.vector_store %arg11[%c0_48, %c0_49], %39 {strides = array<i32>} : memref<144x128xf32, #tpu.memory_space<vmem>>, vector<16x128xf32>,
    %c0_50 = arith.constant 0 : index
    %c1_51 = arith.constant 1 : index
    %41 = vector.load %arg9[%c0_50, %c1_51] : memref<16x150xf32, #tpu.memory_space<vmem>>, vector<16x128xf32>
    %c16_52 = arith.constant 16 : index
    %c0_53 = arith.constant 0 : index
    %42 = vector.load %arg11[%c16_52, %c0_53] : memref<144x128xf32, #tpu.memory_space<vmem>>, vector<16x128xf32>
    tpu.vector_store %arg11[%c16_52, %c0_53], %41 {strides = array<i32>} : memref<144x128xf32, #tpu.memory_space<vmem>>, vector<16x128xf32>,
    %c0_54 = arith.constant 0 : index
    %c2_55 = arith.constant 2 : index
    %43 = vector.load %arg9[%c0_54, %c2_55] : memref<16x150xf32, #tpu.memory_space<vmem>>, vector<16x128xf32>
    %c32_56 = arith.constant 32 : index
    %c0_57 = arith.constant 0 : index
    %44 = vector.load %arg11[%c32_56, %c0_57] : memref<144x128xf32, #tpu.memory_space<vmem>>, vector<16x128xf32>
    tpu.vector_store %arg11[%c32_56, %c0_57], %43 {strides = array<i32>} : memref<144x128xf32, #tpu.memory_space<vmem>>, vector<16x128xf32>,
    %c0_58 = arith.constant 0 : index
    %c10_59 = arith.constant 10 : index
    %45 = vector.load %arg9[%c0_58, %c10_59] : memref<16x150xf32, #tpu.memory_space<vmem>>, vector<16x128xf32>
    %c48 = arith.constant 48 : index
    %c0_60 = arith.constant 0 : index
    %46 = vector.load %arg11[%c48, %c0_60] : memref<144x128xf32, #tpu.memory_space<vmem>>, vector<16x128xf32>
    tpu.vector_store %arg11[%c48, %c0_60], %45 {strides = array<i32>} : memref<144x128xf32, #tpu.memory_space<vmem>>, vector<16x128xf32>,
    %c0_61 = arith.constant 0 : index
    %c11_62 = arith.constant 11 : index
    %47 = vector.load %arg9[%c0_61, %c11_62] : memref<16x150xf32, #tpu.memory_space<vmem>>, vector<16x128xf32>
    %c64_63 = arith.constant 64 : index
    %c0_64 = arith.constant 0 : index
    %48 = vector.load %arg11[%c64_63, %c0_64] : memref<144x128xf32, #tpu.memory_space<vmem>>, vector<16x128xf32>
    tpu.vector_store %arg11[%c64_63, %c0_64], %47 {strides = array<i32>} : memref<144x128xf32, #tpu.memory_space<vmem>>, vector<16x128xf32>,
    %c0_65 = arith.constant 0 : index
    %c12_66 = arith.constant 12 : index
    %49 = vector.load %arg9[%c0_65, %c12_66] : memref<16x150xf32, #tpu.memory_space<vmem>>, vector<16x128xf32>
    %c80 = arith.constant 80 : index
    %c0_67 = arith.constant 0 : index
    %50 = vector.load %arg11[%c80, %c0_67] : memref<144x128xf32, #tpu.memory_space<vmem>>, vector<16x128xf32>
    tpu.vector_store %arg11[%c80, %c0_67], %49 {strides = array<i32>} : memref<144x128xf32, #tpu.memory_space<vmem>>, vector<16x128xf32>,
    %c0_68 = arith.constant 0 : index
    %c20_69 = arith.constant 20 : index
    %51 = vector.load %arg9[%c0_68, %c20_69] : memref<16x150xf32, #tpu.memory_space<vmem>>, vector<16x128xf32>
    %c96_70 = arith.constant 96 : index
    %c0_71 = arith.constant 0 : index
    %52 = vector.load %arg11[%c96_70, %c0_71] : memref<144x128xf32, #tpu.memory_space<vmem>>, vector<16x128xf32>
    tpu.vector_store %arg11[%c96_70, %c0_71], %51 {strides = array<i32>} : memref<144x128xf32, #tpu.memory_space<vmem>>, vector<16x128xf32>,
    %c0_72 = arith.constant 0 : index
    %c21_73 = arith.constant 21 : index
    %53 = vector.load %arg9[%c0_72, %c21_73] : memref<16x150xf32, #tpu.memory_space<vmem>>, vector<16x128xf32>
    %c112 = arith.constant 112 : index
    %c0_74 = arith.constant 0 : index
    %54 = vector.load %arg11[%c112, %c0_74] : memref<144x128xf32, #tpu.memory_space<vmem>>, vector<16x128xf32>
    tpu.vector_store %arg11[%c112, %c0_74], %53 {strides = array<i32>} : memref<144x128xf32, #tpu.memory_space<vmem>>, vector<16x128xf32>,
    %c0_75 = arith.constant 0 : index
    %c22_76 = arith.constant 22 : index
    %55 = vector.load %arg9[%c0_75, %c22_76] : memref<16x150xf32, #tpu.memory_space<vmem>>, vector<16x128xf32>
    %c128_77 = arith.constant 128 : index
    %c0_78 = arith.constant 0 : index
    %56 = vector.load %arg11[%c128_77, %c0_78] : memref<144x128xf32, #tpu.memory_space<vmem>>, vector<16x128xf32>
    tpu.vector_store %arg11[%c128_77, %c0_78], %55 {strides = array<i32>} : memref<144x128xf32, #tpu.memory_space<vmem>>, vector<16x128xf32>,
    %c0_79 = arith.constant 0 : index
    %c0_80 = arith.constant 0 : index
    %57 = vector.load %arg5[%c0_79, %c0_80] : memref<16x144xf32, #tpu.memory_space<vmem>>, vector<16x144xf32>
    %c0_81 = arith.constant 0 : index
    %c0_82 = arith.constant 0 : index
    %58 = vector.load %arg11[%c0_81, %c0_82] : memref<144x128xf32, #tpu.memory_space<vmem>>, vector<144x128xf32>
    %cst_83 = arith.constant dense<0.000000e+00> : vector<16x128xf32>
    %59 = tpu.matmul %57, %58, %cst_83 {dimension_numbers = #tpu.dot_dimension_numbers<[1], [0], [0], [1], [0, 0, 1, 1], [], []>} : vector<16x144xf32>, vector<144x128xf32>, vector<16x128xf32> -> vector<16x128xf32>
    %cst_84 = arith.constant 0.000000e+00 : f32
    %60 = vector.broadcast %cst_84 : f32 to vector<16x128xf32>
    %61 = arith.maximumf %59, %60 : vector<16x128xf32>
    %c0_85 = arith.constant 0 : index
    %c0_86 = arith.constant 0 : index
    %c0_87 = arith.constant 0 : index
    %62 = vector.load %arg7[%c0_85, %c0_86, %c0_87] : memref<1x16x128xf32, #tpu.memory_space<vmem>>, vector<1x16x128xf32>
    %63 = vector.shape_cast %62 : vector<1x16x128xf32> to vector<16x128xf32>
    %64 = vector.shape_cast %61 : vector<16x128xf32> to vector<1x16x128xf32>
    tpu.vector_store %arg7[%c0_85, %c0_86, %c0_87], %64 {strides = array<i32>} : memref<1x16x128xf32, #tpu.memory_space<vmem>>, vector<1x16x128xf32>,
    return
  }
  func.func @transform_0(%arg0: i32) -> (i32, i32, i32) {
    %c0_i32 = arith.constant 0 : i32
    %c0_i32_0 = arith.constant 0 : i32
    %c0_i32_1 = arith.constant 0 : i32
    return %arg0, %c0_i32, %c0_i32_0 : i32, i32, i32
  }
  func.func @transform_1(%arg0: i32) -> (i32, i32, i32) {
    %c0_i32 = arith.constant 0 : i32
    %c0_i32_0 = arith.constant 0 : i32
    %c0_i32_1 = arith.constant 0 : i32
    return %arg0, %c0_i32, %c0_i32_0 : i32, i32, i32
  }
  func.func @transform_2(%arg0: i32) -> (i32, i32) {
    %c0_i32 = arith.constant 0 : i32
    %c0_i32_0 = arith.constant 0 : i32
    %c0_i32_1 = arith.constant 0 : i32
    return %c0_i32, %c0_i32_0 : i32, i32
  }
  func.func @transform_3(%arg0: i32) -> (i32, i32) {
    %c0_i32 = arith.constant 0 : i32
    %c0_i32_0 = arith.constant 0 : i32
    %c0_i32_1 = arith.constant 0 : i32
    return %c0_i32, %c0_i32_0 : i32, i32
  }
  func.func @transform_4(%arg0: i32) -> (i32, i32) {
    %c0_i32 = arith.constant 0 : i32
    %c0_i32_0 = arith.constant 0 : i32
    %c0_i32_1 = arith.constant 0 : i32
    return %c0_i32, %c0_i32_0 : i32, i32
  }
  func.func @transform_5(%arg0: i32) -> (i32, i32) {
    %c0_i32 = arith.constant 0 : i32
    %c0_i32_0 = arith.constant 0 : i32
    %c0_i32_1 = arith.constant 0 : i32
    return %c0_i32, %c0_i32_0 : i32, i32
  }
  func.func @transform_6(%arg0: i32) -> (i32, i32, i32) {
    %c0_i32 = arith.constant 0 : i32
    %c0_i32_0 = arith.constant 0 : i32
    %c0_i32_1 = arith.constant 0 : i32
    return %arg0, %c0_i32, %c0_i32_0 : i32, i32, i32
  }
}

</mosaic_0001>

<llo_original>
// kernel: decoder_block_apply.1
$region0: #{decoder_block_apply.1}
  #allocation0 [shape = 'u32[]', space=smem, size = 0x4, offset = 0x4, fixed_abs, tag = 'smem constant byte address 0x4 - core index']
  #allocation1 [shape = 'u32[144,128]{1,0:T(1,128)}', space=vmem, size = 0x12000, scoped, tag = 'internal scratch']
  #allocation2 [shape = 'f32[32,150]{1,0:T(8,128)}', space=vmem, size = 0x8000, scoped, tag = 'scratch operand']
  #allocation3 [shape = 'f32[16,150]{1,0:T(8,128)}', space=vmem, size = 0x4000, scoped, tag = 'scratch operand']
  #allocation4 [shape = 'f32[288,128]{1,0:T(8,128)}', space=vmem, size = 0x24000, scoped, tag = 'scratch operand']
  #allocation5 [shape = 'f32[144,128]{1,0:T(8,128)}', space=vmem, size = 0x12000, scoped, tag = 'scratch operand']
  %s0 = inlined_call_operand.vmem [shape: f32[2,8,80], index: 0, kind: input, shape index: {}]
  %s1 = inlined_call_operand.vmem [shape: f32[2,16,80], index: 1, kind: input, shape index: {}]
  %s2 = inlined_call_operand.vmem [shape: f32[16,8], index: 2, kind: input, shape index: {}]
  %s3 = inlined_call_operand.vmem [shape: f32[16,288], index: 3, kind: input, shape index: {}]
  %s4 = inlined_call_operand.vmem [shape: f32[16,144], index: 4, kind: input, shape index: {}]
  %s5 = inlined_call_operand.vmem [shape: f32[1,128], index: 5, kind: input, shape index: {}]
  %s6 = inlined_call_operand.vmem [shape: f32[2,16,128], index: 6, kind: output, shape index: {}]
  %s7 = sld [smem:[#allocation0]]
  $region57: #{decoder_block_apply.1} parent=0
    _
  %s9 = ssub.s32 1, %s7
  %s10 = scalar_select 0, %s9, %s7
  loop: start=0, step=1, limit=4
  $region2: #{decoder_block_apply.1} parent=0 // loop_pre_header
    _
  $region3: #{decoder_block_apply.1} parent=0 // loop_header
    %s12 = sphi 0, %s16
    %p13 = scmp.ge.s32.totalorder %s12, 4
    %s22 = sphi 0, %s24
    %s25 = sphi 0, %s22
    %s26 = sphi 0, %s25
    %s42 = sphi 0, %s26
    %s48 = sphi 0, %s50
    %s51 = sphi 0, %s48
    %s52 = sphi 0, %s51
    %s68 = sphi 0, %s52
    %s72 = sphi 0, %s72
    %s74 = sphi 0, %s72
    %s75 = sphi 0, %s74
    %s89 = sphi 0, %s75
    %s93 = sphi 0, %s93
    %s95 = sphi 0, %s93
    %s96 = sphi 0, %s95
    %s110 = sphi 0, %s96
    %s114 = sphi 0, %s114
    %s116 = sphi 0, %s114
    %s117 = sphi 0, %s116
    %s131 = sphi 0, %s117
    %s135 = sphi 0, %s135
    %s137 = sphi 0, %s135
    %s138 = sphi 0, %s137
    %s152 = sphi 0, %s138
    %s158 = sphi 0, %s160
    %s161 = sphi 0, %s158
    %s162 = sphi 0, %s161
    %s178 = sphi 0, %s162
  $region4: #{decoder_block_apply.1} parent=0 // loop_header_branch
    %15 = sbr.rel (%p13) target = $region8
  $region5: #{decoder_block_apply.1} parent=0 // loop_body
    %s17 = ssub.s32 %s12, 1
    %s18 = ssub.s32 %s12, 2
    %s19 = sadd.s32 %s12, 1
    %s20 = ssub.s32 %s12, %s19
    %p21 = scmp.eq.s32.totalorder %s20, 0
    %s23 = sadd.s32 %s22, 1
    %s24 = scalar_select %p21, %s22, %s23
    %p27 = pneg %p21
    %p28 = scmp.eq.s32.totalorder %s12, 1
    %p29 = por %p27, %p28
    %p30 = scmp.ne.s32.totalorder %s22, %s25
    %p31 = scmp.eq.s32.totalorder %s12, 0
    %p32 = por %p30, %p31
    %p33 = scmp.ne.s32.totalorder %s22, %s25
    %p34 = scmp.eq.s32.totalorder %s17, 1
    %p35 = por %p33, %p34
    %p36 = scmp.ne.s32.totalorder %s25, %s26
    %p37 = scmp.eq.s32.totalorder %s17, 0
    %p38 = por %p36, %p37
    %p39 = scmp.ne.s32.totalorder %s25, %s26
    %p40 = scmp.eq.s32.totalorder %s18, 1
    %p41 = por %p39, %p40
    %p43 = scmp.ne.s32.totalorder %s26, %s42
    %p44 = scmp.eq.s32.totalorder %s18, 0
    %p45 = por %p43, %p44
    %s46 = ssub.s32 %s12, %s19
    %p47 = scmp.eq.s32.totalorder %s46, 0
    %s49 = sadd.s32 %s48, 1
    %s50 = scalar_select %p47, %s48, %s49
    %p53 = pneg %p47
    %p54 = scmp.eq.s32.totalorder %s12, 1
    %p55 = por %p53, %p54
    %p56 = scmp.ne.s32.totalorder %s48, %s51
    %p57 = scmp.eq.s32.totalorder %s12, 0
    %p58 = por %p56, %p57
    %p59 = scmp.ne.s32.totalorder %s48, %s51
    %p60 = scmp.eq.s32.totalorder %s17, 1
    %p61 = por %p59, %p60
    %p62 = scmp.ne.s32.totalorder %s51, %s52
    %p63 = scmp.eq.s32.totalorder %s17, 0
    %p64 = por %p62, %p63
    %p65 = scmp.ne.s32.totalorder %s51, %s52
    %p66 = scmp.eq.s32.totalorder %s18, 1
    %p67 = por %p65, %p66
    %p69 = scmp.ne.s32.totalorder %s52, %s68
    %p70 = scmp.eq.s32.totalorder %s18, 0
    %p71 = por %p69, %p70
    %s73 = sadd.s32 %s72, 1
    %p76 = scmp.eq.s32.totalorder %s12, 1
    %p77 = scmp.ne.s32.totalorder %s72, %s74
    %p78 = scmp.eq.s32.totalorder %s12, 0
    %p79 = por %p77, %p78
    %p80 = scmp.ne.s32.totalorder %s72, %s74
    %p81 = scmp.eq.s32.totalorder %s17, 1
    %p82 = por %p80, %p81
    %p83 = scmp.ne.s32.totalorder %s74, %s75
    %p84 = scmp.eq.s32.totalorder %s17, 0
    %p85 = por %p83, %p84
    %p86 = scmp.ne.s32.totalorder %s74, %s75
    %p87 = scmp.eq.s32.totalorder %s18, 1
    %p88 = por %p86, %p87
    %p90 = scmp.ne.s32.totalorder %s75, %s89
    %p91 = scmp.eq.s32.totalorder %s18, 0
    %p92 = por %p90, %p91
    %s94 = sadd.s32 %s93, 1
    %p97 = scmp.eq.s32.totalorder %s12, 1
    %p98 = scmp.ne.s32.totalorder %s93, %s95
    %p99 = scmp.eq.s32.totalorder %s12, 0
    %p100 = por %p98, %p99
    %p101 = scmp.ne.s32.totalorder %s93, %s95
    %p102 = scmp.eq.s32.totalorder %s17, 1
    %p103 = por %p101, %p102
    %p104 = scmp.ne.s32.totalorder %s95, %s96
    %p105 = scmp.eq.s32.totalorder %s17, 0
    %p106 = por %p104, %p105
    %p107 = scmp.ne.s32.totalorder %s95, %s96
    %p108 = scmp.eq.s32.totalorder %s18, 1
    %p109 = por %p107, %p108
    %p111 = scmp.ne.s32.totalorder %s96, %s110
    %p112 = scmp.eq.s32.totalorder %s18, 0
    %p113 = por %p111, %p112
    %s115 = sadd.s32 %s114, 1
    %p118 = scmp.eq.s32.totalorder %s12, 1
    %p119 = scmp.ne.s32.totalorder %s114, %s116
    %p120 = scmp.eq.s32.totalorder %s12, 0
    %p121 = por %p119, %p120
    %p122 = scmp.ne.s32.totalorder %s114, %s116
    %p123 = scmp.eq.s32.totalorder %s17, 1
    %p124 = por %p122, %p123
    %p125 = scmp.ne.s32.totalorder %s116, %s117
    %p126 = scmp.eq.s32.totalorder %s17, 0
    %p127 = por %p125, %p126
    %p128 = scmp.ne.s32.totalorder %s116, %s117
    %p129 = scmp.eq.s32.totalorder %s18, 1
    %p130 = por %p128, %p129
    %p132 = scmp.ne.s32.totalorder %s117, %s131
    %p133 = scmp.eq.s32.totalorder %s18, 0
    %p134 = por %p132, %p133
    %s136 = sadd.s32 %s135, 1
    %p139 = scmp.eq.s32.totalorder %s12, 1
    %p140 = scmp.ne.s32.totalorder %s135, %s137
    %p141 = scmp.eq.s32.totalorder %s12, 0
    %p142 = por %p140, %p141
    %p143 = scmp.ne.s32.totalorder %s135, %s137
    %p144 = scmp.eq.s32.totalorder %s17, 1
    %p145 = por %p143, %p144
    %p146 = scmp.ne.s32.totalorder %s137, %s138
    %p147 = scmp.eq.s32.totalorder %s17, 0
    %p148 = por %p146, %p147
    %p149 = scmp.ne.s32.totalorder %s137, %s138
    %p150 = scmp.eq.s32.totalorder %s18, 1
    %p151 = por %p149, %p150
    %p153 = scmp.ne.s32.totalorder %s138, %s152
    %p154 = scmp.eq.s32.totalorder %s18, 0
    %p155 = por %p153, %p154
    %s156 = ssub.s32 %s12, %s19
    %p157 = scmp.eq.s32.totalorder %s156, 0
    %s159 = sadd.s32 %s158, 1
    %s160 = scalar_select %p157, %s158, %s159
    %p163 = pneg %p157
    %p164 = scmp.eq.s32.totalorder %s12, 1
    %p165 = por %p163, %p164
    %p166 = scmp.ne.s32.totalorder %s158, %s161
    %p167 = scmp.eq.s32.totalorder %s12, 0
    %p168 = por %p166, %p167
    %p169 = scmp.ne.s32.totalorder %s158, %s161
    %p170 = scmp.eq.s32.totalorder %s17, 1
    %p171 = por %p169, %p170
    %p172 = scmp.ne.s32.totalorder %s161, %s162
    %p173 = scmp.eq.s32.totalorder %s17, 0
    %p174 = por %p172, %p173
    %p175 = scmp.ne.s32.totalorder %s161, %s162
    %p176 = scmp.eq.s32.totalorder %s18, 1
    %p177 = por %p175, %p176
    %p179 = scmp.ne.s32.totalorder %s162, %s178
    %p180 = scmp.eq.s32.totalorder %s18, 0
    %p181 = por %p179, %p180
    %p182 = scmp.le.s32.totalorder 1, %s12
    %p183 = scmp.lt.s32.totalorder %s12, 3
    %p184 = pnand %p182, %p183
    %p185 = pneg %p184
    // Predicated region
    $region9: #{decoder_block_apply.1} parent=5 // pred_check
      _
    $region10: #{decoder_block_apply.1} parent=5 // pred_check_branch
      %187 = sbr.rel (%p184) target = $region12
    $region11: #{decoder_block_apply.1} parent=5 // pred_region
      %s188 = ssub.s32 %s12, 1
      // Predicated region
      $region13: #{decoder_block_apply.1} parent=11 // pred_check
        %p189 = pneg %p85
      $region14: #{decoder_block_apply.1} parent=11 // pred_check_branch
        %191 = sbr.rel (%p189) target = $region16
      $region15: #{decoder_block_apply.1} parent=11 // pred_region
        _
      $region16: #{decoder_block_apply.1} parent=11 // pred_fallthru
        _
      // Predicated region
      $region17: #{decoder_block_apply.1} parent=11 // pred_check
        %p192 = pneg %p106
      $region18: #{decoder_block_apply.1} parent=11 // pred_check_branch
        %194 = sbr.rel (%p192) target = $region20
      $region19: #{decoder_block_apply.1} parent=11 // pred_region
        _
      $region20: #{decoder_block_apply.1} parent=11 // pred_fallthru
        _
      // Predicated region
      $region21: #{decoder_block_apply.1} parent=11 // pred_check
        %p195 = pneg %p127
      $region22: #{decoder_block_apply.1} parent=11 // pred_check_branch
        %197 = sbr.rel (%p195) target = $region24
      $region23: #{decoder_block_apply.1} parent=11 // pred_region
        _
      $region24: #{decoder_block_apply.1} parent=11 // pred_fallthru
        _
      // Predicated region
      $region25: #{decoder_block_apply.1} parent=11 // pred_check
        %p198 = pneg %p148
      $region26: #{decoder_block_apply.1} parent=11 // pred_check_branch
        %200 = sbr.rel (%p198) target = $region28
      $region27: #{decoder_block_apply.1} parent=11 // pred_region
        _
      $region28: #{decoder_block_apply.1} parent=11 // pred_fallthru
        _
    $region12: #{decoder_block_apply.1} parent=5 // pred_fallthru
      _
    %p201 = scmp.lt.s32.totalorder %s12, 2
    // Predicated region
    $region29: #{decoder_block_apply.1} parent=5 // pred_check
      %p202 = pneg %p201
    $region30: #{decoder_block_apply.1} parent=5 // pred_check_branch
      %204 = sbr.rel (%p202) target = $region32
    $region31: #{decoder_block_apply.1} parent=5 // pred_region
      // Predicated region
      $region33: #{decoder_block_apply.1} parent=31 // pred_check
        %p205 = pneg %p32
      $region34: #{decoder_block_apply.1} parent=31 // pred_check_branch
        %207 = sbr.rel (%p205) target = $region36
      $region35: #{decoder_block_apply.1} parent=31 // pred_region
        %p208 = scmp.lt.s32.totalorder %s12, 1
        %s209 = scalar_select %p208, %s12, 1
        %s210 = smul.addr %s209, 8
        %s211 = scalar_lea.vmem %s0, %s210
      $region36: #{decoder_block_apply.1} parent=31 // pred_fallthru
        _
      // Predicated region
      $region37: #{decoder_block_apply.1} parent=31 // pred_check
        %p212 = pneg %p58
      $region38: #{decoder_block_apply.1} parent=31 // pred_check_branch
        %214 = sbr.rel (%p212) target = $region40
      $region39: #{decoder_block_apply.1} parent=31 // pred_region
        %p215 = scmp.lt.s32.totalorder %s12, 1
        %s216 = scalar_select %p215, %s12, 1
        %s217 = smul.addr %s216, 2
        %s218 = smul.addr %s217, 8
        %s219 = scalar_lea.vmem %s1, %s218
      $region40: #{decoder_block_apply.1} parent=31 // pred_fallthru
        _
    $region32: #{decoder_block_apply.1} parent=5 // pred_fallthru
      _
    %p220 = scmp.le.s32.totalorder 1, %s12
    %p221 = scmp.lt.s32.totalorder %s12, 3
    %p222 = pnand %p220, %p221
    %p223 = pneg %p222
    // Predicated region
    $region41: #{decoder_block_apply.1} parent=5 // pred_check
      _
    $region42: #{decoder_block_apply.1} parent=5 // pred_check_branch
      %225 = sbr.rel (%p222) target = $region44
    $region43: #{decoder_block_apply.1} parent=5 // pred_region
      %s226 = ssub.s32 %s12, 1
      %p227 = scmp.lt.s32.totalorder %s17, 1
      %s228 = scalar_select %p227, %s17, 1
      %s229 = smul.addr %s228, 8
      %s230 = scalar_lea.vmem %s0, %s229
      %p231 = pneg %p38
      %p232 = pneg %p35
      %p233 = scmp.lt.s32.totalorder %s17, 1
      %s234 = scalar_select %p233, %s17, 1
      %s235 = smul.addr %s234, 2
      %s236 = smul.addr %s235, 8
      %s237 = scalar_lea.vmem %s1, %s236
      %p238 = pneg %p64
      %p239 = pneg %p61
      %p240 = pneg %p85
      %p241 = pneg %p82
      %p242 = pneg %p106
      %p243 = pneg %p103
      %p244 = pneg %p127
      %p245 = pneg %p124
      %p246 = pneg %p148
      %p247 = pneg %p145
      %p248 = pneg %p174
      %p249 = pneg %p171
      %p250 = scmp.lt.s32.totalorder %s17, 1
      %s251 = scalar_select %p250, %s17, 1
      %s252 = smul.addr %s251, 2
      %s253 = smul.addr %s252, 8
      %s254 = scalar_lea.vmem %s6, %s253
      %p255 = scmp.lt.s32.totalorder %s17, 1
      %s256 = scalar_select %p255, %s17, 1
      %s257 = smul.addr %s256, 8
      %s258 = scalar_lea.vmem %s0, %s257
      %p259 = scmp.lt.s32.totalorder %s17, 1
      %s260 = scalar_select %p259, %s17, 1
      %s261 = smul.addr %s260, 2
      %s262 = smul.addr %s261, 8
      %s263 = scalar_lea.vmem %s1, %s262
      %p264 = scmp.lt.s32.totalorder %s17, 1
      %s265 = scalar_select %p264, %s17, 1
      %s266 = smul.addr %s265, 2
      %s267 = smul.addr %s266, 8
      %s268 = scalar_lea.vmem %s6, %s267
      %269 = vst [vmem:[#allocation2] sm:$0xff] 0.0
      %vm270 = vcmask 179200
      %271 = vst.msk [vmem:[#allocation2 + $0x8] sm:$0xff] %vm270, 0.0
      %272 = vst [vmem:[#allocation2 + $0x10] sm:$0xff] 0.0
      %273 = vst.msk [vmem:[#allocation2 + $0x18] sm:$0xff] %vm270, 0.0
      %274 = vst [vmem:[#allocation2 + $0x20] sm:$0xff] 0.0
      %275 = vst.msk [vmem:[#allocation2 + $0x28] sm:$0xff] %vm270, 0.0
      %276 = vst [vmem:[#allocation2 + $0x30] sm:$0xff] 0.0
      %277 = vst.msk [vmem:[#allocation2 + $0x38] sm:$0xff] %vm270, 0.0
      %278 = vst [vmem:[#allocation3] sm:$0xff] 0.0
      %279 = vst.msk [vmem:[#allocation3 + $0x8] sm:$0xff] %vm270, 0.0
      %280 = vst [vmem:[#allocation3 + $0x10] sm:$0xff] 0.0
      %281 = vst.msk [vmem:[#allocation3 + $0x18] sm:$0xff] %vm270, 0.0
      %v282 = vld [vmem:[%s2] sm:$0xff]
      %v283 = vld [vmem:[%s2 + $0x8] sm:$0xff]
      %v284 = vld [vmem:[%s258] sm:$0xff]
      %vm285 = vcmask 64512
      %v287 = vsel %vm285, %v282, 0
      %v290 = vsel %vm285, %v283, 0
      %292 = vmatprep.subr.mxu0 0.0
      %293 = vmatpush1.msra.mxu0 %v284
      %294 = vmatprep.subr.mxu0 0.0
      %295 = vmatpush1.msra.mxu0 0.0
      %296 = vmatprep.subr.mxu0 0.0
      %297 = vmatpush1.msra.mxu0 0.0
      %298 = vmatprep.subr.mxu0 0.0
      %299 = vmatpush1.msra.mxu0 0.0
      %300 = vmatprep.subr.mxu0 0.0
      %301 = vmatpush1.msra.mxu0 0.0
      %302 = vmatprep.subr.mxu0 0.0
      %303 = vmatpush1.msra.mxu0 0.0
      %304 = vmatprep.subr.mxu0 0.0
      %305 = vmatpush1.msra.mxu0 0.0
      %306 = vmatprep.subr.mxu0 0.0
      %307 = vmatpush1.msra.mxu0 0.0
      %308 = vmatprep.subr.mxu0 0.0
      %309 = vmatpush1.msra.mxu0 0.0
      %310 = vmatprep.subr.mxu0 0.0
      %311 = vmatpush1.msra.mxu0 0.0
      %312 = vmatprep.subr.mxu0 0.0
      %313 = vmatpush1.msra.mxu0 0.0
      %314 = vmatprep.subr.mxu0 0.0
      %315 = vmatpush1.msra.mxu0 0.0
      %316 = vmatprep.subr.mxu0 0.0
      %317 = vmatpush1.msra.mxu0 0.0
      %318 = vmatprep.subr.mxu0 0.0
      %319 = vmatpush1.msra.mxu0 0.0
      %320 = vmatprep.subr.mxu0 0.0
      %321 = vmatpush1.msra.mxu0 0.0
      %322 = vmatprep.subr.mxu0 0.0
      %323 = vmatpush1.msra.mxu0 0.0
      %324 = vmatprep.subr.mxu0 0.0
      %325 = vmatpush1.msra.mxu0 0.0
      %326 = vmatprep.subr.mxu0 0.0
      %327 = vmatpush1.msra.mxu0 0.0
      %328 = vmatprep.subr.mxu0 0.0
      %329 = vmatpush1.msra.mxu0 0.0
      %330 = vmatprep.subr.mxu0 0.0
      %331 = vmatpush1.msra.mxu0 0.0
      %332 = vmatprep.subr.mxu0 0.0
      %333 = vmatpush1.msra.mxu0 0.0
      %334 = vmatprep.subr.mxu0 0.0
      %335 = vmatpush1.msra.mxu0 0.0
      %336 = vmatprep.subr.mxu0 0.0
      %337 = vmatpush1.msra.mxu0 0.0
      %338 = vmatprep.subr.mxu0 0.0
      %339 = vmatpush1.msra.mxu0 0.0
      %340 = vmatprep.subr.mxu0 0.0
      %341 = vmatpush1.msra.mxu0 0.0
      %342 = vmatprep.subr.mxu0 0.0
      %343 = vmatpush1.msra.mxu0 0.0
      %344 = vmatprep.subr.mxu0 0.0
      %345 = vmatpush1.msra.mxu0 0.0
      %346 = vmatprep.subr.mxu0 0.0
      %347 = vmatpush1.msra.mxu0 0.0
      %348 = vmatprep.subr.mxu0 0.0
      %349 = vmatpush1.msra.mxu0 0.0
      %350 = vmatprep.subr.mxu0 0.0
      %351 = vmatpush1.msra.mxu0 0.0
      %352 = vmatprep.subr.mxu0 0.0
      %353 = vmatpush1.msra.mxu0 0.0
      %354 = vmatprep.subr.mxu0 0.0
      %355 = vmatpush1.msra.mxu0 0.0
      %356 = vmatprep.mubr.f32.mxu0 0.0
      %357 = vmatmul.mubr.f32.gmra.mrb[0].mxu0 %v287
      %v358 = vpop.f32.mrb[0].mxu0
      %v359 = vadd.f32 0.0, %v358
      %v360 = vpop.f32.mrb[0].mxu0
      %361 = vmatprep.mubr.f32.mxu0 0.0
      %362 = vmatmul.mubr.f32.gmra.mrb[0].mxu0 %v290
      %v363 = vpop.f32.mrb[0].mxu0
      %v364 = vadd.f32 0.0, %v363
      %v365 = vpop.f32.mrb[0].mxu0
      %366 = vdwg.mxu0
      %369 = vrot.lane.b32.xlu0 %v359, 21
      %v370 = vpop.permute.xlu0 %369
      %371 = vrot.lane.b32.xlu0 %v364, 21
      %v372 = vpop.permute.xlu0 %371
      %vm375 = vcmask 826536
      %376 = vst.msk [vmem:[#allocation2] sm:$0xff] %vm375, %v370
      %377 = vst.msk [vmem:[#allocation2 + $0x10] sm:$0xff] %vm375, %v372
      %v378 = vld [vmem:[%s263] sm:$0xff]
      %v379 = vld [vmem:[%s263 + $0x8] sm:$0xff]
      %382 = vrot.lane.b32.xlu0 %v378, 21
      %v383 = vpop.permute.xlu0 %382
      %384 = vrot.lane.b32.xlu0 %v379, 21
      %v385 = vpop.permute.xlu0 %384
      %388 = vst.msk [vmem:[#allocation2 + $0x20] sm:$0xff] %vm375, %v383
      %389 = vst.msk [vmem:[#allocation2 + $0x30] sm:$0xff] %vm375, %v385
      %v390 = vld [vmem:[#allocation2] sm:$0xff]
      %v391 = vld [vmem:[#allocation2 + $0x10] sm:$0xff]
      %v392 = vld [vmem:[#allocation2 + $0x20] sm:$0xff]
      %v393 = vld [vmem:[#allocation2 + $0x30] sm:$0xff]
      %394 = vst [vmem:[#allocation4] sm:$0xff] %v390
      %395 = vst [vmem:[#allocation4 + $0x8] sm:$0xff] %v391
      %396 = vst [vmem:[#allocation4 + $0x10] sm:$0xff] %v392
      %397 = vst [vmem:[#allocation4 + $0x18] sm:$0xff] %v393
      %v398 = vld [vmem:[#allocation2] sm:$0xff]
      %v399 = vld [vmem:[#allocation2 + $0x8] sm:$0xff]
      %v400 = vld [vmem:[#allocation2 + $0x10] sm:$0xff]
      %v401 = vld [vmem:[#allocation2 + $0x18] sm:$0xff]
      %v402 = vld [vmem:[#allocation2 + $0x20] sm:$0xff]
      %v403 = vld [vmem:[#allocation2 + $0x28] sm:$0xff]
      %v404 = vld [vmem:[#allocation2 + $0x30] sm:$0xff]
      %v405 = vld [vmem:[#allocation2 + $0x38] sm:$0xff]
      %414 = vrot.lane.b32.xlu0 %v398, 127
      %v415 = vpop.permute.xlu0 %414
      %416 = vrot.lane.b32.xlu0 %v399, 127
      %v417 = vpop.permute.xlu0 %416
      %418 = vrot.lane.b32.xlu0 %v400, 127
      %v419 = vpop.permute.xlu0 %418
      %420 = vrot.lane.b32.xlu0 %v401, 127
      %v421 = vpop.permute.xlu0 %420
      %422 = vrot.lane.b32.xlu0 %v402, 127
      %v423 = vpop.permute.xlu0 %422
      %424 = vrot.lane.b32.xlu0 %v403, 127
      %v425 = vpop.permute.xlu0 %424
      %426 = vrot.lane.b32.xlu0 %v404, 127
      %v427 = vpop.permute.xlu0 %426
      %428 = vrot.lane.b32.xlu0 %v405, 127
      %v429 = vpop.permute.xlu0 %428
      %vm430 = vcmask 1039360
      %v431 = vsel %vm430, %v415, %v417
      %v432 = vsel %vm430, %v419, %v421
      %v433 = vsel %vm430, %v423, %v425
      %v434 = vsel %vm430, %v427, %v429
      %439 = vst [vmem:[#allocation4 + $0x20] sm:$0xff] %v431
      %440 = vst [vmem:[#allocation4 + $0x28] sm:$0xff] %v432
      %441 = vst [vmem:[#allocation4 + $0x30] sm:$0xff] %v433
      %442 = vst [vmem:[#allocation4 + $0x38] sm:$0xff] %v434
      %v443 = vld [vmem:[#allocation2] sm:$0xff]
      %v444 = vld [vmem:[#allocation2 + $0x8] sm:$0xff]
      %v445 = vld [vmem:[#allocation2 + $0x10] sm:$0xff]
      %v446 = vld [vmem:[#allocation2 + $0x18] sm:$0xff]
      %v447 = vld [vmem:[#allocation2 + $0x20] sm:$0xff]
      %v448 = vld [vmem:[#allocation2 + $0x28] sm:$0xff]
      %v449 = vld [vmem:[#allocation2 + $0x30] sm:$0xff]
      %v450 = vld [vmem:[#allocation2 + $0x38] sm:$0xff]
      %459 = vrot.lane.b32.xlu0 %v443, 126
      %v460 = vpop.permute.xlu0 %459
      %461 = vrot.lane.b32.xlu0 %v444, 126
      %v462 = vpop.permute.xlu0 %461
      %463 = vrot.lane.b32.xlu0 %v445, 126
      %v464 = vpop.permute.xlu0 %463
      %465 = vrot.lane.b32.xlu0 %v446, 126
      %v466 = vpop.permute.xlu0 %465
      %467 = vrot.lane.b32.xlu0 %v447, 126
      %v468 = vpop.permute.xlu0 %467
      %469 = vrot.lane.b32.xlu0 %v448, 126
      %v470 = vpop.permute.xlu0 %469
      %471 = vrot.lane.b32.xlu0 %v449, 126
      %v472 = vpop.permute.xlu0 %471
      %473 = vrot.lane.b32.xlu0 %v450, 126
      %v474 = vpop.permute.xlu0 %473
      %vm475 = vcmask 1031168
      %v476 = vsel %vm475, %v460, %v462
      %v477 = vsel %vm475, %v464, %v466
      %v478 = vsel %vm475, %v468, %v470
      %v479 = vsel %vm475, %v472, %v474
      %484 = vst [vmem:[#allocation4 + $0x40] sm:$0xff] %v476
      %485 = vst [vmem:[#allocation4 + $0x48] sm:$0xff] %v477
      %486 = vst [vmem:[#allocation4 + $0x50] sm:$0xff] %v478
      %487 = vst [vmem:[#allocation4 + $0x58] sm:$0xff] %v479
      %v488 = vld [vmem:[#allocation2] sm:$0xff]
      %v489 = vld [vmem:[#allocation2 + $0x8] sm:$0xff]
      %v490 = vld [vmem:[#allocation2 + $0x10] sm:$0xff]
      %v491 = vld [vmem:[#allocation2 + $0x18] sm:$0xff]
      %v492 = vld [vmem:[#allocation2 + $0x20] sm:$0xff]
      %v493 = vld [vmem:[#allocation2 + $0x28] sm:$0xff]
      %v494 = vld [vmem:[#allocation2 + $0x30] sm:$0xff]
      %v495 = vld [vmem:[#allocation2 + $0x38] sm:$0xff]
      %504 = vrot.lane.b32.xlu0 %v488, 118
      %v505 = vpop.permute.xlu0 %504
      %506 = vrot.lane.b32.xlu0 %v489, 118
      %v507 = vpop.permute.xlu0 %506
      %508 = vrot.lane.b32.xlu0 %v490, 118
      %v509 = vpop.permute.xlu0 %508
      %510 = vrot.lane.b32.xlu0 %v491, 118
      %v511 = vpop.permute.xlu0 %510
      %512 = vrot.lane.b32.xlu0 %v492, 118
      %v513 = vpop.permute.xlu0 %512
      %514 = vrot.lane.b32.xlu0 %v493, 118
      %v515 = vpop.permute.xlu0 %514
      %516 = vrot.lane.b32.xlu0 %v494, 118
      %v517 = vpop.permute.xlu0 %516
      %518 = vrot.lane.b32.xlu0 %v495, 118
      %v519 = vpop.permute.xlu0 %518
      %vm520 = vcmask 965632
      %v521 = vsel %vm520, %v505, %v507
      %v522 = vsel %vm520, %v509, %v511
      %v523 = vsel %vm520, %v513, %v515
      %v524 = vsel %vm520, %v517, %v519
      %529 = vst [vmem:[#allocation4 + $0x60] sm:$0xff] %v521
      %530 = vst [vmem:[#allocation4 + $0x68] sm:$0xff] %v522
      %531 = vst [vmem:[#allocation4 + $0x70] sm:$0xff] %v523
      %532 = vst [vmem:[#allocation4 + $0x78] sm:$0xff] %v524
      %v533 = vld [vmem:[#allocation2] sm:$0xff]
      %v534 = vld [vmem:[#allocation2 + $0x8] sm:$0xff]
      %v535 = vld [vmem:[#allocation2 + $0x10] sm:$0xff]
      %v536 = vld [vmem:[#allocation2 + $0x18] sm:$0xff]
      %v537 = vld [vmem:[#allocation2 + $0x20] sm:$0xff]
      %v538 = vld [vmem:[#allocation2 + $0x28] sm:$0xff]
      %v539 = vld [vmem:[#allocation2 + $0x30] sm:$0xff]
      %v540 = vld [vmem:[#allocation2 + $0x38] sm:$0xff]
      %549 = vrot.lane.b32.xlu0 %v533, 117
      %v550 = vpop.permute.xlu0 %549
      %551 = vrot.lane.b32.xlu0 %v534, 117
      %v552 = vpop.permute.xlu0 %551
      %553 = vrot.lane.b32.xlu0 %v535, 117
      %v554 = vpop.permute.xlu0 %553
      %555 = vrot.lane.b32.xlu0 %v536, 117
      %v556 = vpop.permute.xlu0 %555
      %557 = vrot.lane.b32.xlu0 %v537, 117
      %v558 = vpop.permute.xlu0 %557
      %559 = vrot.lane.b32.xlu0 %v538, 117
      %v560 = vpop.permute.xlu0 %559
      %561 = vrot.lane.b32.xlu0 %v539, 117
      %v562 = vpop.permute.xlu0 %561
      %563 = vrot.lane.b32.xlu0 %v540, 117
      %v564 = vpop.permute.xlu0 %563
      %vm565 = vcmask 957440
      %v566 = vsel %vm565, %v550, %v552
      %v567 = vsel %vm565, %v554, %v556
      %v568 = vsel %vm565, %v558, %v560
      %v569 = vsel %vm565, %v562, %v564
      %574 = vst [vmem:[#allocation4 + $0x80] sm:$0xff] %v566
      %575 = vst [vmem:[#allocation4 + $0x88] sm:$0xff] %v567
      %576 = vst [vmem:[#allocation4 + $0x90] sm:$0xff] %v568
      %577 = vst [vmem:[#allocation4 + $0x98] sm:$0xff] %v569
      %v578 = vld [vmem:[#allocation2] sm:$0xff]
      %v579 = vld [vmem:[#allocation2 + $0x8] sm:$0xff]
      %v580 = vld [vmem:[#allocation2 + $0x10] sm:$0xff]
      %v581 = vld [vmem:[#allocation2 + $0x18] sm:$0xff]
      %v582 = vld [vmem:[#allocation2 + $0x20] sm:$0xff]
      %v583 = vld [vmem:[#allocation2 + $0x28] sm:$0xff]
      %v584 = vld [vmem:[#allocation2 + $0x30] sm:$0xff]
      %v585 = vld [vmem:[#allocation2 + $0x38] sm:$0xff]
      %594 = vrot.lane.b32.xlu0 %v578, 116
      %v595 = vpop.permute.xlu0 %594
      %596 = vrot.lane.b32.xlu0 %v579, 116
      %v597 = vpop.permute.xlu0 %596
      %598 = vrot.lane.b32.xlu0 %v580, 116
      %v599 = vpop.permute.xlu0 %598
      %600 = vrot.lane.b32.xlu0 %v581, 116
      %v601 = vpop.permute.xlu0 %600
      %602 = vrot.lane.b32.xlu0 %v582, 116
      %v603 = vpop.permute.xlu0 %602
      %604 = vrot.lane.b32.xlu0 %v583, 116
      %v605 = vpop.permute.xlu0 %604
      %606 = vrot.lane.b32.xlu0 %v584, 116
      %v607 = vpop.permute.xlu0 %606
      %608 = vrot.lane.b32.xlu0 %v585, 116
      %v609 = vpop.permute.xlu0 %608
      %vm610 = vcmask 949248
      %v611 = vsel %vm610, %v595, %v597
      %v612 = vsel %vm610, %v599, %v601
      %v613 = vsel %vm610, %v603, %v605
      %v614 = vsel %vm610, %v607, %v609
      %619 = vst [vmem:[#allocation4 + $0xa0] sm:$0xff] %v611
      %620 = vst [vmem:[#allocation4 + $0xa8] sm:$0xff] %v612
      %621 = vst [vmem:[#allocation4 + $0xb0] sm:$0xff] %v613
      %622 = vst [vmem:[#allocation4 + $0xb8] sm:$0xff] %v614
      %v623 = vld [vmem:[#allocation2] sm:$0xff]
      %v624 = vld [vmem:[#allocation2 + $0x8] sm:$0xff]
      %v625 = vld [vmem:[#allocation2 + $0x10] sm:$0xff]
      %v626 = vld [vmem:[#allocation2 + $0x18] sm:$0xff]
      %v627 = vld [vmem:[#allocation2 + $0x20] sm:$0xff]
      %v628 = vld [vmem:[#allocation2 + $0x28] sm:$0xff]
      %v629 = vld [vmem:[#allocation2 + $0x30] sm:$0xff]
      %v630 = vld [vmem:[#allocation2 + $0x38] sm:$0xff]
      %639 = vrot.lane.b32.xlu0 %v623, 108
      %v640 = vpop.permute.xlu0 %639
      %641 = vrot.lane.b32.xlu0 %v624, 108
      %v642 = vpop.permute.xlu0 %641
      %643 = vrot.lane.b32.xlu0 %v625, 108
      %v644 = vpop.permute.xlu0 %643
      %645 = vrot.lane.b32.xlu0 %v626, 108
      %v646 = vpop.permute.xlu0 %645
      %647 = vrot.lane.b32.xlu0 %v627, 108
      %v648 = vpop.permute.xlu0 %647
      %649 = vrot.lane.b32.xlu0 %v628, 108
      %v650 = vpop.permute.xlu0 %649
      %651 = vrot.lane.b32.xlu0 %v629, 108
      %v652 = vpop.permute.xlu0 %651
      %653 = vrot.lane.b32.xlu0 %v630, 108
      %v654 = vpop.permute.xlu0 %653
      %vm655 = vcmask 883712
      %v656 = vsel %vm655, %v640, %v642
      %v657 = vsel %vm655, %v644, %v646
      %v658 = vsel %vm655, %v648, %v650
      %v659 = vsel %vm655, %v652, %v654
      %664 = vst [vmem:[#allocation4 + $0xc0] sm:$0xff] %v656
      %665 = vst [vmem:[#allocation4 + $0xc8] sm:$0xff] %v657
      %666 = vst [vmem:[#allocation4 + $0xd0] sm:$0xff] %v658
      %667 = vst [vmem:[#allocation4 + $0xd8] sm:$0xff] %v659
      %v668 = vld [vmem:[#allocation2] sm:$0xff]
      %v669 = vld [vmem:[#allocation2 + $0x8] sm:$0xff]
      %v670 = vld [vmem:[#allocation2 + $0x10] sm:$0xff]
      %v671 = vld [vmem:[#allocation2 + $0x18] sm:$0xff]
      %v672 = vld [vmem:[#allocation2 + $0x20] sm:$0xff]
      %v673 = vld [vmem:[#allocation2 + $0x28] sm:$0xff]
      %v674 = vld [vmem:[#allocation2 + $0x30] sm:$0xff]
      %v675 = vld [vmem:[#allocation2 + $0x38] sm:$0xff]
      %684 = vrot.lane.b32.xlu0 %v668, 107
      %v685 = vpop.permute.xlu0 %684
      %686 = vrot.lane.b32.xlu0 %v669, 107
      %v687 = vpop.permute.xlu0 %686
      %688 = vrot.lane.b32.xlu0 %v670, 107
      %v689 = vpop.permute.xlu0 %688
      %690 = vrot.lane.b32.xlu0 %v671, 107
      %v691 = vpop.permute.xlu0 %690
      %692 = vrot.lane.b32.xlu0 %v672, 107
      %v693 = vpop.permute.xlu0 %692
      %694 = vrot.lane.b32.xlu0 %v673, 107
      %v695 = vpop.permute.xlu0 %694
      %696 = vrot.lane.b32.xlu0 %v674, 107
      %v697 = vpop.permute.xlu0 %696
      %698 = vrot.lane.b32.xlu0 %v675, 107
      %v699 = vpop.permute.xlu0 %698
      %vm700 = vcmask 875520
      %v701 = vsel %vm700, %v685, %v687
      %v702 = vsel %vm700, %v689, %v691
      %v703 = vsel %vm700, %v693, %v695
      %v704 = vsel %vm700, %v697, %v699
      %709 = vst [vmem:[#allocation4 + $0xe0] sm:$0xff] %v701
      %710 = vst [vmem:[#allocation4 + $0xe8] sm:$0xff] %v702
      %711 = vst [vmem:[#allocation4 + $0xf0] sm:$0xff] %v703
      %712 = vst [vmem:[#allocation4 + $0xf8] sm:$0xff] %v704
      %v713 = vld [vmem:[#allocation2] sm:$0xff]
      %v714 = vld [vmem:[#allocation2 + $0x8] sm:$0xff]
      %v715 = vld [vmem:[#allocation2 + $0x10] sm:$0xff]
      %v716 = vld [vmem:[#allocation2 + $0x18] sm:$0xff]
      %v717 = vld [vmem:[#allocation2 + $0x20] sm:$0xff]
      %v718 = vld [vmem:[#allocation2 + $0x28] sm:$0xff]
      %v719 = vld [vmem:[#allocation2 + $0x30] sm:$0xff]
      %v720 = vld [vmem:[#allocation2 + $0x38] sm:$0xff]
      %729 = vrot.lane.b32.xlu0 %v713, 106
      %v730 = vpop.permute.xlu0 %729
      %731 = vrot.lane.b32.xlu0 %v714, 106
      %v732 = vpop.permute.xlu0 %731
      %733 = vrot.lane.b32.xlu0 %v715, 106
      %v734 = vpop.permute.xlu0 %733
      %735 = vrot.lane.b32.xlu0 %v716, 106
      %v736 = vpop.permute.xlu0 %735
      %737 = vrot.lane.b32.xlu0 %v717, 106
      %v738 = vpop.permute.xlu0 %737
      %739 = vrot.lane.b32.xlu0 %v718, 106
      %v740 = vpop.permute.xlu0 %739
      %741 = vrot.lane.b32.xlu0 %v719, 106
      %v742 = vpop.permute.xlu0 %741
      %743 = vrot.lane.b32.xlu0 %v720, 106
      %v744 = vpop.permute.xlu0 %743
      %vm745 = vcmask 867328
      %v746 = vsel %vm745, %v730, %v732
      %v747 = vsel %vm745, %v734, %v736
      %v748 = vsel %vm745, %v738, %v740
      %v749 = vsel %vm745, %v742, %v744
      %754 = vst [vmem:[#allocation4 + $0x100] sm:$0xff] %v746
      %755 = vst [vmem:[#allocation4 + $0x108] sm:$0xff] %v747
      %756 = vst [vmem:[#allocation4 + $0x110] sm:$0xff] %v748
      %757 = vst [vmem:[#allocation4 + $0x118] sm:$0xff] %v749
      %v758 = vld [vmem:[%s3] sm:$0xff]
      %v759 = vld [vmem:[%s3 + $0x8] sm:$0xff]
      %v760 = vld [vmem:[%s3 + $0x10] sm:$0xff]
      %v761 = vld [vmem:[%s3 + $0x18] sm:$0xff]
      %v762 = vld [vmem:[%s3 + $0x20] sm:$0xff]
      %v763 = vld [vmem:[%s3 + $0x28] sm:$0xff]
      %v764 = vld [vmem:[#allocation4] sm:$0xff]
      %v765 = vld [vmem:[#allocation4 + $0x8] sm:$0xff]
      %v766 = vld [vmem:[#allocation4 + $0x10] sm:$0xff]
      %v767 = vld [vmem:[#allocation4 + $0x18] sm:$0xff]
      %v768 = vld [vmem:[#allocation4 + $0x20] sm:$0xff]
      %v769 = vld [vmem:[#allocation4 + $0x28] sm:$0xff]
      %v770 = vld [vmem:[#allocation4 + $0x30] sm:$0xff]
      %v771 = vld [vmem:[#allocation4 + $0x38] sm:$0xff]
      %v772 = vld [vmem:[#allocation4 + $0x40] sm:$0xff]
      %v773 = vld [vmem:[#allocation4 + $0x48] sm:$0xff]
      %v774 = vld [vmem:[#allocation4 + $0x50] sm:$0xff]
      %v775 = vld [vmem:[#allocation4 + $0x58] sm:$0xff]
      %v776 = vld [vmem:[#allocation4 + $0x60] sm:$0xff]
      %v777 = vld [vmem:[#allocation4 + $0x68] sm:$0xff]
      %v778 = vld [vmem:[#allocation4 + $0x70] sm:$0xff]
      %v779 = vld [vmem:[#allocation4 + $0x78] sm:$0xff]
      %v780 = vld [vmem:[#allocation4 + $0x80] sm:$0xff]
      %v781 = vld [vmem:[#allocation4 + $0x88] sm:$0xff]
      %v782 = vld [vmem:[#allocation4 + $0x90] sm:$0xff]
      %v783 = vld [vmem:[#allocation4 + $0x98] sm:$0xff]
      %v784 = vld [vmem:[#allocation4 + $0xa0] sm:$0xff]
      %v785 = vld [vmem:[#allocation4 + $0xa8] sm:$0xff]
      %v786 = vld [vmem:[#allocation4 + $0xb0] sm:$0xff]
      %v787 = vld [vmem:[#allocation4 + $0xb8] sm:$0xff]
      %v788 = vld [vmem:[#allocation4 + $0xc0] sm:$0xff]
      %v789 = vld [vmem:[#allocation4 + $0xc8] sm:$0xff]
      %v790 = vld [vmem:[#allocation4 + $0xd0] sm:$0xff]
      %v791 = vld [vmem:[#allocation4 + $0xd8] sm:$0xff]
      %v792 = vld [vmem:[#allocation4 + $0xe0] sm:$0xff]
      %v793 = vld [vmem:[#allocation4 + $0xe8] sm:$0xff]
      %v794 = vld [vmem:[#allocation4 + $0xf0] sm:$0xff]
      %v795 = vld [vmem:[#allocation4 + $0xf8] sm:$0xff]
      %v796 = vld [vmem:[#allocation4 + $0x100] sm:$0xff]
      %v797 = vld [vmem:[#allocation4 + $0x108] sm:$0xff]
      %v798 = vld [vmem:[#allocation4 + $0x110] sm:$0xff]
      %v799 = vld [vmem:[#allocation4 + $0x118] sm:$0xff]
      %vm800 = vcmask 261120
      %v802 = vsel %vm800, %v760, 0
      %v805 = vsel %vm800, %v763, 0
      %807 = vmatprep.subr.mxu0 0.0
      %808 = vmatpush1.msra.mxu0 %v764
      %809 = vmatprep.subr.mxu0 0.0
      %810 = vmatpush1.msra.mxu0 %v765
      %811 = vmatprep.subr.mxu0 0.0
      %812 = vmatpush1.msra.mxu0 %v766
      %813 = vmatprep.subr.mxu0 0.0
      %814 = vmatpush1.msra.mxu0 %v767
      %815 = vmatprep.subr.mxu0 0.0
      %816 = vmatpush1.msra.mxu0 %v768
      %817 = vmatprep.subr.mxu0 0.0
      %818 = vmatpush1.msra.mxu0 %v769
      %819 = vmatprep.subr.mxu0 0.0
      %820 = vmatpush1.msra.mxu0 %v770
      %821 = vmatprep.subr.mxu0 0.0
      %822 = vmatpush1.msra.mxu0 %v771
      %823 = vmatprep.subr.mxu0 0.0
      %824 = vmatpush1.msra.mxu0 %v772
      %825 = vmatprep.subr.mxu0 0.0
      %826 = vmatpush1.msra.mxu0 %v773
      %827 = vmatprep.subr.mxu0 0.0
      %828 = vmatpush1.msra.mxu0 %v774
      %829 = vmatprep.subr.mxu0 0.0
      %830 = vmatpush1.msra.mxu0 %v775
      %831 = vmatprep.subr.mxu0 0.0
      %832 = vmatpush1.msra.mxu0 %v776
      %833 = vmatprep.subr.mxu0 0.0
      %834 = vmatpush1.msra.mxu0 %v777
      %835 = vmatprep.subr.mxu0 0.0
      %836 = vmatpush1.msra.mxu0 %v778
      %837 = vmatprep.subr.mxu0 0.0
      %838 = vmatpush1.msra.mxu0 %v779
      %839 = vmatprep.subr.mxu0 0.0
      %840 = vmatpush1.msra.mxu0 %v780
      %841 = vmatprep.subr.mxu0 0.0
      %842 = vmatpush1.msra.mxu0 %v781
      %843 = vmatprep.subr.mxu0 0.0
      %844 = vmatpush1.msra.mxu0 %v782
      %845 = vmatprep.subr.mxu0 0.0
      %846 = vmatpush1.msra.mxu0 %v783
      %847 = vmatprep.subr.mxu0 0.0
      %848 = vmatpush1.msra.mxu0 %v784
      %849 = vmatprep.subr.mxu0 0.0
      %850 = vmatpush1.msra.mxu0 %v785
      %851 = vmatprep.subr.mxu0 0.0
      %852 = vmatpush1.msra.mxu0 %v786
      %853 = vmatprep.subr.mxu0 0.0
      %854 = vmatpush1.msra.mxu0 %v787
      %855 = vmatprep.subr.mxu0 0.0
      %856 = vmatpush1.msra.mxu0 %v788
      %857 = vmatprep.subr.mxu0 0.0
      %858 = vmatpush1.msra.mxu0 %v789
      %859 = vmatprep.subr.mxu0 0.0
      %860 = vmatpush1.msra.mxu0 %v790
      %861 = vmatprep.subr.mxu0 0.0
      %862 = vmatpush1.msra.mxu0 %v791
      %863 = vmatprep.subr.mxu0 0.0
      %864 = vmatpush1.msra.mxu0 %v792
      %865 = vmatprep.subr.mxu0 0.0
      %866 = vmatpush1.msra.mxu0 %v793
      %867 = vmatprep.subr.mxu0 0.0
      %868 = vmatpush1.msra.mxu0 %v794
      %869 = vmatprep.subr.mxu0 0.0
      %870 = vmatpush1.msra.mxu0 %v795
      %871 = vmatprep.mubr.f32.mxu0 %v759
      %872 = vmatmul.mubr.f32.gmra.mrb[0].mxu0 %v758
      %v873 = vpop.f32.mrb[0].mxu0
      %v874 = vadd.f32 0.0, %v873
      %v875 = vpop.f32.mrb[0].mxu0
      %876 = vmatprep.mubr.f32.mxu0 %v762
      %877 = vmatmul.mubr.f32.gmra.mrb[0].mxu0 %v761
      %v878 = vpop.f32.mrb[0].mxu0
      %v879 = vadd.f32 0.0, %v878
      %v880 = vpop.f32.mrb[0].mxu0
      %881 = vdwg.mxu0
      %882 = vmatprep.subr.mxu0 0.0
      %883 = vmatpush1.msra.mxu0 %v796
      %884 = vmatprep.subr.mxu0 0.0
      %885 = vmatpush1.msra.mxu0 %v797
      %886 = vmatprep.subr.mxu0 0.0
      %887 = vmatpush1.msra.mxu0 %v798
      %888 = vmatprep.subr.mxu0 0.0
      %889 = vmatpush1.msra.mxu0 %v799
      %890 = vmatprep.subr.mxu0 0.0
      %891 = vmatpush1.msra.mxu0 0.0
      %892 = vmatprep.subr.mxu0 0.0
      %893 = vmatpush1.msra.mxu0 0.0
      %894 = vmatprep.subr.mxu0 0.0
      %895 = vmatpush1.msra.mxu0 0.0
      %896 = vmatprep.subr.mxu0 0.0
      %897 = vmatpush1.msra.mxu0 0.0
      %898 = vmatprep.subr.mxu0 0.0
      %899 = vmatpush1.msra.mxu0 0.0
      %900 = vmatprep.subr.mxu0 0.0
      %901 = vmatpush1.msra.mxu0 0.0
      %902 = vmatprep.subr.mxu0 0.0
      %903 = vmatpush1.msra.mxu0 0.0
      %904 = vmatprep.subr.mxu0 0.0
      %905 = vmatpush1.msra.mxu0 0.0
      %906 = vmatprep.subr.mxu0 0.0
      %907 = vmatpush1.msra.mxu0 0.0
      %908 = vmatprep.subr.mxu0 0.0
      %909 = vmatpush1.msra.mxu0 0.0
      %910 = vmatprep.subr.mxu0 0.0
      %911 = vmatpush1.msra.mxu0 0.0
      %912 = vmatprep.subr.mxu0 0.0
      %913 = vmatpush1.msra.mxu0 0.0
      %914 = vmatprep.subr.mxu0 0.0
      %915 = vmatpush1.msra.mxu0 0.0
      %916 = vmatprep.subr.mxu0 0.0
      %917 = vmatpush1.msra.mxu0 0.0
      %918 = vmatprep.subr.mxu0 0.0
      %919 = vmatpush1.msra.mxu0 0.0
      %920 = vmatprep.subr.mxu0 0.0
      %921 = vmatpush1.msra.mxu0 0.0
      %922 = vmatprep.subr.mxu0 0.0
      %923 = vmatpush1.msra.mxu0 0.0
      %924 = vmatprep.subr.mxu0 0.0
      %925 = vmatpush1.msra.mxu0 0.0
      %926 = vmatprep.subr.mxu0 0.0
      %927 = vmatpush1.msra.mxu0 0.0
      %928 = vmatprep.subr.mxu0 0.0
      %929 = vmatpush1.msra.mxu0 0.0
      %930 = vmatprep.subr.mxu0 0.0
      %931 = vmatpush1.msra.mxu0 0.0
      %932 = vmatprep.subr.mxu0 0.0
      %933 = vmatpush1.msra.mxu0 0.0
      %934 = vmatprep.subr.mxu0 0.0
      %935 = vmatpush1.msra.mxu0 0.0
      %936 = vmatprep.subr.mxu0 0.0
      %937 = vmatpush1.msra.mxu0 0.0
      %938 = vmatprep.subr.mxu0 0.0
      %939 = vmatpush1.msra.mxu0 0.0
      %940 = vmatprep.subr.mxu0 0.0
      %941 = vmatpush1.msra.mxu0 0.0
      %942 = vmatprep.subr.mxu0 0.0
      %943 = vmatpush1.msra.mxu0 0.0
      %944 = vmatprep.subr.mxu0 0.0
      %945 = vmatpush1.msra.mxu0 0.0
      %946 = vmatprep.mubr.f32.mxu0 0.0
      %947 = vmatmul.mubr.f32.gmra.mrb[0].mxu0 %v802
      %v948 = vpop.f32.mrb[0].mxu0
      %v949 = vadd.f32 %v874, %v948
      %v950 = vpop.f32.mrb[0].mxu0
      %951 = vmatprep.mubr.f32.mxu0 0.0
      %952 = vmatmul.mubr.f32.gmra.mrb[0].mxu0 %v805
      %v953 = vpop.f32.mrb[0].mxu0
      %v954 = vadd.f32 %v879, %v953
      %v955 = vpop.f32.mrb[0].mxu0
      %956 = vdwg.mxu0
      %v957 = vmax.f32 %v949, 0.0
      %v958 = vmax.f32 %v954, 0.0
      %v959 = vld [vmem:[%s5] sm:$0x1]
      %v961 = vlaneseq
      %v962 = vshrl.u32 %v961, 7
      %v963 = vsub.s32 0, %v962
      %v964 = vrot.slane %v959, %v963
      %v966 = vmul.f32 %v957, %v964
      %v967 = vmul.f32 %v958, %v964
      %970 = vrot.lane.b32.xlu0 %v966, 11
      %v971 = vpop.permute.xlu0 %970
      %972 = vrot.lane.b32.xlu0 %v967, 11
      %v973 = vpop.permute.xlu0 %972
      %vm976 = vcmask 1047640
      %977 = vst.msk [vmem:[#allocation3] sm:$0xff] %vm976, %v971
      %vm978 = vcmask 89088
      %979 = vst.msk [vmem:[#allocation3 + $0x8] sm:$0xff] %vm978, %v971
      %980 = vst.msk [vmem:[#allocation3 + $0x10] sm:$0xff] %vm976, %v973
      %981 = vst.msk [vmem:[#allocation3 + $0x18] sm:$0xff] %vm978, %v973
      %v982 = vld [vmem:[#allocation3] sm:$0xff]
      %v983 = vld [vmem:[#allocation3 + $0x10] sm:$0xff]
      %984 = vst [vmem:[#allocation5] sm:$0xff] %v982
      %985 = vst [vmem:[#allocation5 + $0x8] sm:$0xff] %v983
      %v986 = vld [vmem:[#allocation3] sm:$0xff]
      %v987 = vld [vmem:[#allocation3 + $0x8] sm:$0xff]
      %v988 = vld [vmem:[#allocation3 + $0x10] sm:$0xff]
      %v989 = vld [vmem:[#allocation3 + $0x18] sm:$0xff]
      %994 = vrot.lane.b32.xlu0 %v986, 127
      %v995 = vpop.permute.xlu0 %994
      %996 = vrot.lane.b32.xlu0 %v987, 127
      %v997 = vpop.permute.xlu0 %996
      %998 = vrot.lane.b32.xlu0 %v988, 127
      %v999 = vpop.permute.xlu0 %998
      %1000 = vrot.lane.b32.xlu0 %v989, 127
      %v1001 = vpop.permute.xlu0 %1000
      %v1002 = vsel %vm430, %v995, %v997
      %v1003 = vsel %vm430, %v999, %v1001
      %1006 = vst [vmem:[#allocation5 + $0x10] sm:$0xff] %v1002
      %1007 = vst [vmem:[#allocation5 + $0x18] sm:$0xff] %v1003
      %v1008 = vld [vmem:[#allocation3] sm:$0xff]
      %v1009 = vld [vmem:[#allocation3 + $0x8] sm:$0xff]
      %v1010 = vld [vmem:[#allocation3 + $0x10] sm:$0xff]
      %v1011 = vld [vmem:[#allocation3 + $0x18] sm:$0xff]
      %1016 = vrot.lane.b32.xlu0 %v1008, 126
      %v1017 = vpop.permute.xlu0 %1016
      %1018 = vrot.lane.b32.xlu0 %v1009, 126
      %v1019 = vpop.permute.xlu0 %1018
      %1020 = vrot.lane.b32.xlu0 %v1010, 126
      %v1021 = vpop.permute.xlu0 %1020
      %1022 = vrot.lane.b32.xlu0 %v1011, 126
      %v1023 = vpop.permute.xlu0 %1022
      %v1024 = vsel %vm475, %v1017, %v1019
      %v1025 = vsel %vm475, %v1021, %v1023
      %1028 = vst [vmem:[#allocation5 + $0x20] sm:$0xff] %v1024
      %1029 = vst [vmem:[#allocation5 + $0x28] sm:$0xff] %v1025
      %v1030 = vld [vmem:[#allocation3] sm:$0xff]
      %v1031 = vld [vmem:[#allocation3 + $0x8] sm:$0xff]
      %v1032 = vld [vmem:[#allocation3 + $0x10] sm:$0xff]
      %v1033 = vld [vmem:[#allocation3 + $0x18] sm:$0xff]
      %1038 = vrot.lane.b32.xlu0 %v1030, 118
      %v1039 = vpop.permute.xlu0 %1038
      %1040 = vrot.lane.b32.xlu0 %v1031, 118
      %v1041 = vpop.permute.xlu0 %1040
      %1042 = vrot.lane.b32.xlu0 %v1032, 118
      %v1043 = vpop.permute.xlu0 %1042
      %1044 = vrot.lane.b32.xlu0 %v1033, 118
      %v1045 = vpop.permute.xlu0 %1044
      %v1046 = vsel %vm520, %v1039, %v1041
      %v1047 = vsel %vm520, %v1043, %v1045
      %1050 = vst [vmem:[#allocation5 + $0x30] sm:$0xff] %v1046
      %1051 = vst [vmem:[#allocation5 + $0x38] sm:$0xff] %v1047
      %v1052 = vld [vmem:[#allocation3] sm:$0xff]
      %v1053 = vld [vmem:[#allocation3 + $0x8] sm:$0xff]
      %v1054 = vld [vmem:[#allocation3 + $0x10] sm:$0xff]
      %v1055 = vld [vmem:[#allocation3 + $0x18] sm:$0xff]
      %1060 = vrot.lane.b32.xlu0 %v1052, 117
      %v1061 = vpop.permute.xlu0 %1060
      %1062 = vrot.lane.b32.xlu0 %v1053, 117
      %v1063 = vpop.permute.xlu0 %1062
      %1064 = vrot.lane.b32.xlu0 %v1054, 117
      %v1065 = vpop.permute.xlu0 %1064
      %1066 = vrot.lane.b32.xlu0 %v1055, 117
      %v1067 = vpop.permute.xlu0 %1066
      %v1068 = vsel %vm565, %v1061, %v1063
      %v1069 = vsel %vm565, %v1065, %v1067
      %1072 = vst [vmem:[#allocation5 + $0x40] sm:$0xff] %v1068
      %1073 = vst [vmem:[#allocation5 + $0x48] sm:$0xff] %v1069
      %v1074 = vld [vmem:[#allocation3] sm:$0xff]
      %v1075 = vld [vmem:[#allocation3 + $0x8] sm:$0xff]
      %v1076 = vld [vmem:[#allocation3 + $0x10] sm:$0xff]
      %v1077 = vld [vmem:[#allocation3 + $0x18] sm:$0xff]
      %1082 = vrot.lane.b32.xlu0 %v1074, 116
      %v1083 = vpop.permute.xlu0 %1082
      %1084 = vrot.lane.b32.xlu0 %v1075, 116
      %v1085 = vpop.permute.xlu0 %1084
      %1086 = vrot.lane.b32.xlu0 %v1076, 116
      %v1087 = vpop.permute.xlu0 %1086
      %1088 = vrot.lane.b32.xlu0 %v1077, 116
      %v1089 = vpop.permute.xlu0 %1088
      %v1090 = vsel %vm610, %v1083, %v1085
      %v1091 = vsel %vm610, %v1087, %v1089
      %1094 = vst [vmem:[#allocation5 + $0x50] sm:$0xff] %v1090
      %1095 = vst [vmem:[#allocation5 + $0x58] sm:$0xff] %v1091
      %v1096 = vld [vmem:[#allocation3] sm:$0xff]
      %v1097 = vld [vmem:[#allocation3 + $0x8] sm:$0xff]
      %v1098 = vld [vmem:[#allocation3 + $0x10] sm:$0xff]
      %v1099 = vld [vmem:[#allocation3 + $0x18] sm:$0xff]
      %1104 = vrot.lane.b32.xlu0 %v1096, 108
      %v1105 = vpop.permute.xlu0 %1104
      %1106 = vrot.lane.b32.xlu0 %v1097, 108
      %v1107 = vpop.permute.xlu0 %1106
      %1108 = vrot.lane.b32.xlu0 %v1098, 108
      %v1109 = vpop.permute.xlu0 %1108
      %1110 = vrot.lane.b32.xlu0 %v1099, 108
      %v1111 = vpop.permute.xlu0 %1110
      %v1112 = vsel %vm655, %v1105, %v1107
      %v1113 = vsel %vm655, %v1109, %v1111
      %1116 = vst [vmem:[#allocation5 + $0x60] sm:$0xff] %v1112
      %1117 = vst [vmem:[#allocation5 + $0x68] sm:$0xff] %v1113
      %v1118 = vld [vmem:[#allocation3] sm:$0xff]
      %v1119 = vld [vmem:[#allocation3 + $0x8] sm:$0xff]
      %v1120 = vld [vmem:[#allocation3 + $0x10] sm:$0xff]
      %v1121 = vld [vmem:[#allocation3 + $0x18] sm:$0xff]
      %1126 = vrot.lane.b32.xlu0 %v1118, 107
      %v1127 = vpop.permute.xlu0 %1126
      %1128 = vrot.lane.b32.xlu0 %v1119, 107
      %v1129 = vpop.permute.xlu0 %1128
      %1130 = vrot.lane.b32.xlu0 %v1120, 107
      %v1131 = vpop.permute.xlu0 %1130
      %1132 = vrot.lane.b32.xlu0 %v1121, 107
      %v1133 = vpop.permute.xlu0 %1132
      %v1134 = vsel %vm700, %v1127, %v1129
      %v1135 = vsel %vm700, %v1131, %v1133
      %1138 = vst [vmem:[#allocation5 + $0x70] sm:$0xff] %v1134
      %1139 = vst [vmem:[#allocation5 + $0x78] sm:$0xff] %v1135
      %v1140 = vld [vmem:[#allocation3] sm:$0xff]
      %v1141 = vld [vmem:[#allocation3 + $0x8] sm:$0xff]
      %v1142 = vld [vmem:[#allocation3 + $0x10] sm:$0xff]
      %v1143 = vld [vmem:[#allocation3 + $0x18] sm:$0xff]
      %1148 = vrot.lane.b32.xlu0 %v1140, 106
      %v1149 = vpop.permute.xlu0 %1148
      %1150 = vrot.lane.b32.xlu0 %v1141, 106
      %v1151 = vpop.permute.xlu0 %1150
      %1152 = vrot.lane.b32.xlu0 %v1142, 106
      %v1153 = vpop.permute.xlu0 %1152
      %1154 = vrot.lane.b32.xlu0 %v1143, 106
      %v1155 = vpop.permute.xlu0 %1154
      %v1156 = vsel %vm745, %v1149, %v1151
      %v1157 = vsel %vm745, %v1153, %v1155
      %1160 = vst [vmem:[#allocation5 + $0x80] sm:$0xff] %v1156
      %1161 = vst [vmem:[#allocation5 + $0x88] sm:$0xff] %v1157
      %v1162 = vld [vmem:[%s4] sm:$0xff]
      %v1163 = vld [vmem:[%s4 + $0x8] sm:$0xff]
      %v1164 = vld [vmem:[%s4 + $0x10] sm:$0xff]
      %v1165 = vld [vmem:[%s4 + $0x18] sm:$0xff]
      %v1166 = vld [vmem:[#allocation5] sm:$0xff]
      %v1167 = vld [vmem:[#allocation5 + $0x8] sm:$0xff]
      %v1168 = vld [vmem:[#allocation5 + $0x10] sm:$0xff]
      %v1169 = vld [vmem:[#allocation5 + $0x18] sm:$0xff]
      %v1170 = vld [vmem:[#allocation5 + $0x20] sm:$0xff]
      %v1171 = vld [vmem:[#allocation5 + $0x28] sm:$0xff]
      %v1172 = vld [vmem:[#allocation5 + $0x30] sm:$0xff]
      %v1173 = vld [vmem:[#allocation5 + $0x38] sm:$0xff]
      %v1174 = vld [vmem:[#allocation5 + $0x40] sm:$0xff]
      %v1175 = vld [vmem:[#allocation5 + $0x48] sm:$0xff]
      %v1176 = vld [vmem:[#allocation5 + $0x50] sm:$0xff]
      %v1177 = vld [vmem:[#allocation5 + $0x58] sm:$0xff]
      %v1178 = vld [vmem:[#allocation5 + $0x60] sm:$0xff]
      %v1179 = vld [vmem:[#allocation5 + $0x68] sm:$0xff]
      %v1180 = vld [vmem:[#allocation5 + $0x70] sm:$0xff]
      %v1181 = vld [vmem:[#allocation5 + $0x78] sm:$0xff]
      %v1182 = vld [vmem:[#allocation5 + $0x80] sm:$0xff]
      %v1183 = vld [vmem:[#allocation5 + $0x88] sm:$0xff]
      %vm1184 = vcmask 130048
      %v1186 = vsel %vm1184, %v1163, 0
      %v1189 = vsel %vm1184, %v1165, 0
      %1191 = vmatprep.subr.mxu0 0.0
      %1192 = vmatpush1.msra.mxu0 %v1166
      %1193 = vmatprep.subr.mxu0 0.0
      %1194 = vmatpush1.msra.mxu0 %v1167
      %1195 = vmatprep.subr.mxu0 0.0
      %1196 = vmatpush1.msra.mxu0 %v1168
      %1197 = vmatprep.subr.mxu0 0.0
      %1198 = vmatpush1.msra.mxu0 %v1169
      %1199 = vmatprep.subr.mxu0 0.0
      %1200 = vmatpush1.msra.mxu0 %v1170
      %1201 = vmatprep.subr.mxu0 0.0
      %1202 = vmatpush1.msra.mxu0 %v1171
      %1203 = vmatprep.subr.mxu0 0.0
      %1204 = vmatpush1.msra.mxu0 %v1172
      %1205 = vmatprep.subr.mxu0 0.0
      %1206 = vmatpush1.msra.mxu0 %v1173
      %1207 = vmatprep.subr.mxu0 0.0
      %1208 = vmatpush1.msra.mxu0 %v1174
      %1209 = vmatprep.subr.mxu0 0.0
      %1210 = vmatpush1.msra.mxu0 %v1175
      %1211 = vmatprep.subr.mxu0 0.0
      %1212 = vmatpush1.msra.mxu0 %v1176
      %1213 = vmatprep.subr.mxu0 0.0
      %1214 = vmatpush1.msra.mxu0 %v1177
      %1215 = vmatprep.subr.mxu0 0.0
      %1216 = vmatpush1.msra.mxu0 %v1178
      %1217 = vmatprep.subr.mxu0 0.0
      %1218 = vmatpush1.msra.mxu0 %v1179
      %1219 = vmatprep.subr.mxu0 0.0
      %1220 = vmatpush1.msra.mxu0 %v1180
      %1221 = vmatprep.subr.mxu0 0.0
      %1222 = vmatpush1.msra.mxu0 %v1181
      %1223 = vmatprep.subr.mxu0 0.0
      %1224 = vmatpush1.msra.mxu0 %v1182
      %1225 = vmatprep.subr.mxu0 0.0
      %1226 = vmatpush1.msra.mxu0 %v1183
      %1227 = vmatprep.subr.mxu0 0.0
      %1228 = vmatpush1.msra.mxu0 0.0
      %1229 = vmatprep.subr.mxu0 0.0
      %1230 = vmatpush1.msra.mxu0 0.0
      %1231 = vmatprep.subr.mxu0 0.0
      %1232 = vmatpush1.msra.mxu0 0.0
      %1233 = vmatprep.subr.mxu0 0.0
      %1234 = vmatpush1.msra.mxu0 0.0
      %1235 = vmatprep.subr.mxu0 0.0
      %1236 = vmatpush1.msra.mxu0 0.0
      %1237 = vmatprep.subr.mxu0 0.0
      %1238 = vmatpush1.msra.mxu0 0.0
      %1239 = vmatprep.subr.mxu0 0.0
      %1240 = vmatpush1.msra.mxu0 0.0
      %1241 = vmatprep.subr.mxu0 0.0
      %1242 = vmatpush1.msra.mxu0 0.0
      %1243 = vmatprep.subr.mxu0 0.0
      %1244 = vmatpush1.msra.mxu0 0.0
      %1245 = vmatprep.subr.mxu0 0.0
      %1246 = vmatpush1.msra.mxu0 0.0
      %1247 = vmatprep.subr.mxu0 0.0
      %1248 = vmatpush1.msra.mxu0 0.0
      %1249 = vmatprep.subr.mxu0 0.0
      %1250 = vmatpush1.msra.mxu0 0.0
      %1251 = vmatprep.subr.mxu0 0.0
      %1252 = vmatpush1.msra.mxu0 0.0
      %1253 = vmatprep.subr.mxu0 0.0
      %1254 = vmatpush1.msra.mxu0 0.0
      %1255 = vmatprep.mubr.f32.mxu0 %v1186
      %1256 = vmatmul.mubr.f32.gmra.mrb[0].mxu0 %v1162
      %v1257 = vpop.f32.mrb[0].mxu0
      %v1258 = vadd.f32 0.0, %v1257
      %v1259 = vpop.f32.mrb[0].mxu0
      %1260 = vmatprep.mubr.f32.mxu0 %v1189
      %1261 = vmatmul.mubr.f32.gmra.mrb[0].mxu0 %v1164
      %v1262 = vpop.f32.mrb[0].mxu0
      %v1263 = vadd.f32 0.0, %v1262
      %v1264 = vpop.f32.mrb[0].mxu0
      %1265 = vdwg.mxu0
      %v1266 = vmax.f32 %v1258, 0.0
      %v1267 = vmax.f32 %v1263, 0.0
      %1268 = vst [vmem:[%s268] sm:$0xff] %v1266
      %1269 = vst [vmem:[%s268 + $0x8] sm:$0xff] %v1267
      %p1270 = scmp.lt.s32.totalorder %s17, 1
      %s1271 = scalar_select %p1270, %s17, 1
      %s1272 = smul.addr %s1271, 2
      %s1273 = smul.addr %s1272, 8
      %s1274 = scalar_lea.vmem %s6, %s1273
      // Predicated region
      $region45: #{decoder_block_apply.1} parent=43 // pred_check
        %p1275 = pneg %p171
      $region46: #{decoder_block_apply.1} parent=43 // pred_check_branch
        %1277 = sbr.rel (%p1275) target = $region48
      $region47: #{decoder_block_apply.1} parent=43 // pred_region
        _
      $region48: #{decoder_block_apply.1} parent=43 // pred_fallthru
        _
    $region44: #{decoder_block_apply.1} parent=5 // pred_fallthru
      _
    %p1278 = scmp.le.s32.totalorder 2, %s12
    // Predicated region
    $region49: #{decoder_block_apply.1} parent=5 // pred_check
      %p1279 = pneg %p1278
    $region50: #{decoder_block_apply.1} parent=5 // pred_check_branch
      %1281 = sbr.rel (%p1279) target = $region52
    $region51: #{decoder_block_apply.1} parent=5 // pred_region
      %s1282 = ssub.s32 %s12, 2
      // Predicated region
      $region53: #{decoder_block_apply.1} parent=51 // pred_check
        %p1283 = pneg %p177
      $region54: #{decoder_block_apply.1} parent=51 // pred_check_branch
        %1285 = sbr.rel (%p1283) target = $region56
      $region55: #{decoder_block_apply.1} parent=51 // pred_region
        %p1286 = scmp.lt.s32.totalorder %s18, 1
        %s1287 = scalar_select %p1286, %s18, 1
        %s1288 = smul.addr %s1287, 2
        %s1289 = smul.addr %s1288, 8
        %s1290 = scalar_lea.vmem %s6, %s1289
      $region56: #{decoder_block_apply.1} parent=51 // pred_fallthru
        _
    $region52: #{decoder_block_apply.1} parent=5 // pred_fallthru
      _
  $region6: #{decoder_block_apply.1} parent=0 // loop_footer
    %s16 = sadd.s32 1, %s12
  $region7: #{decoder_block_apply.1} parent=0 // loop_footer_branch
    %11 = sbr.rel target = $region3
  $region8: #{decoder_block_apply.1} parent=0 // loop_exit
    _

</llo_original>
